<compile_context>
chip_gen: v7x
topology: tpu7x:2x2x1
jax: 0.10.0
libtpu: 0.0.40
codegen_flags: <defaults>
</compile_context>

<pallas_src>
import functools

import jax
import jax.numpy as jnp
from jax.experimental import pallas as pl
from jax.experimental.pallas import tpu as pltpu

LANE = 128


# ----------------------------------------------------------------------------
# Pallas kernel: out = act(x @ w + b), tiled over (M, N, K) with f32 accumulation
# ----------------------------------------------------------------------------
def _matmul_bias_act_kernel(x_ref, w_ref, b_ref, o_ref, acc_ref, *, relu):
    k = pl.program_id(2)

    @pl.when(k == 0)
    def _init():
        acc_ref[...] = jnp.zeros_like(acc_ref)

    acc_ref[...] += jnp.dot(x_ref[...], w_ref[...],
                            preferred_element_type=jnp.float32)

    @pl.when(k == pl.num_programs(2) - 1)
    def _finalize():
        out = acc_ref[...] + b_ref[...]          # bias (1, bn) broadcasts over rows
        if relu:
            out = jnp.maximum(out, 0.0)
        o_ref[...] = out.astype(o_ref.dtype)


def _pick_tile(dim, candidates):
    for c in candidates:
        if dim >= c and dim % c == 0:
            return c
    return dim  # fall back to a full-extent block (always legal per the (8,128) rule)


def matmul_bias_act(x, w, b, *, relu, out_dtype):
    """act(x @ w + b): tiled & pipelined MXU GEMM.

    x: (M, K) bf16 activations, w: (K, N) bf16 (cast once at init), b: (N,) f32.
    Tiles are capped at 512 so the double-buffered bf16 working set stays at a few MiB,
    comfortably inside scoped VMEM on v5e (16 MiB default), v6e (128 MiB) and v7x (64 MiB).
    """
    M, K = x.shape
    K2, N = w.shape
    assert K == K2, (K, K2)
    bm = _pick_tile(M, (512, 256, 128, 64, 32, 16, 8))
    bn = _pick_tile(N, (512, 256, 128))
    bk = _pick_tile(K, (512, 256, 128))
    grid = (M // bm, N // bn, K // bk)

    return pl.pallas_call(
        functools.partial(_matmul_bias_act_kernel, relu=relu),
        out_shape=jax.ShapeDtypeStruct((M, N), out_dtype),
        grid_spec=pltpu.PrefetchScalarGridSpec(
            num_scalar_prefetch=0,
            grid=grid,
            in_specs=[
                pl.BlockSpec((bm, bk), lambda i, j, k: (i, k)),
                pl.BlockSpec((bk, bn), lambda i, j, k: (k, j)),
                pl.BlockSpec((1, bn), lambda i, j, k: (0, j)),
            ],
            out_specs=pl.BlockSpec((bm, bn), lambda i, j, k: (i, j)),
            scratch_shapes=[pltpu.VMEM((bm, bn), jnp.float32)],
        ),
        compiler_params=pltpu.CompilerParams(
            # Reduction (K) last and "arbitrary"; M/N parallel -> shards over v7x's 2 TCs.
            dimension_semantics=("parallel", "parallel", "arbitrary"),
            # Explicit scoped-VMEM limit (raises v5e's 16 MiB default; fits v6e/v7x).
            vmem_limit_bytes=32 * 1024 * 1024,
        ),
    )(x.astype(jnp.bfloat16), w, b.reshape(1, N).astype(jnp.float32))


def _matmul_bias_act_reference(x, w, b, *, relu, out_dtype):
    """Same math as the kernel, plain jnp (used for the kernel-level correctness check)."""
    y = jnp.dot(x, w, preferred_element_type=jnp.float32) + b.reshape(1, -1).astype(jnp.float32)
    if relu:
        y = jnp.maximum(y, 0.0)
    return y.astype(out_dtype)


# ----------------------------------------------------------------------------
# Glue: im2col (NHWC) — patch row order is (kh, kw, c); weights are laid out to match.
# ----------------------------------------------------------------------------
def im2col(x_nhwc, kh, kw, stride, padding):
    n, h, w, c = x_nhwc.shape
    xp = jnp.pad(x_nhwc, ((0, 0), (padding, padding), (padding, padding), (0, 0)))
    oh = (h + 2 * padding - kh) // stride + 1
    ow = (w + 2 * padding - kw) // stride + 1
    patches = []
    for i in range(kh):
        for j in range(kw):
            patches.append(xp[:, i:i + stride * oh:stride, j:j + stride * ow:stride, :])
    cols = jnp.concatenate(patches, axis=-1)            # (N, OH, OW, kh*kw*C)
    return cols.reshape(n * oh * ow, kh * kw * c), oh, ow


# ----------------------------------------------------------------------------
# ConvEncoder forward (all GEMM/bias/ReLU compute in the Pallas kernel)
# ----------------------------------------------------------------------------
def conv_encoder_forward(params, x_nchw, conv_geom, aux=None, *,
                         aux_size, latent_dim, use_pallas=True):
    mm = matmul_bias_act if use_pallas else _matmul_bias_act_reference

    if aux_size == 0:
        aux = None

    x = jnp.transpose(x_nchw, (0, 2, 3, 1)).astype(jnp.bfloat16)  # NCHW->NHWC, bf16 once
    n = x.shape[0]

    # CNN: conv (im2col GEMM) + ReLU per layer; outputs stay bf16 with 128-padded channels.
    for (w, b), (k, s, p) in zip(params["conv"], conv_geom):
        cols, oh, ow = im2col(x, k, k, s, p)
        y = mm(cols, w, b, relu=True, out_dtype=jnp.bfloat16)
        x = y.reshape(n, oh, ow, w.shape[1])

    # NHWC flatten: no transpose needed — FC-1 weight rows were permuted at init to match.
    emb = x.reshape(n, -1)
    if aux is not None:
        emb = jnp.concatenate([emb, aux.astype(jnp.bfloat16)], axis=-1)

    # Dense: Linear + ReLU per layer.
    for (w, b) in params["fc"]:
        emb = mm(emb, w, b, relu=True, out_dtype=jnp.bfloat16)

    # Fused mu/logvar head (single lane-dense GEMM), split outside the kernel.
    heads = mm(emb, params["heads"][0], params["heads"][1],
               relu=False, out_dtype=jnp.float32)
    return heads[:, :latent_dim], heads[:, latent_dim:2 * latent_dim]


# ----------------------------------------------------------------------------
# Torch-layout synthetic init + torch-semantics f32 reference
# ----------------------------------------------------------------------------
def init_torch_params(key, in_channels, img_size, conv_spec, fc_layers, latent_dim,
                      aux_size=0):
    """Weights in PyTorch layout: conv (out_c, in_c, kh, kw), linear (out, in); f32."""
    p = {"conv": [], "fc": []}
    c, hw = in_channels, img_size
    for (out_c, k, s, pad) in conv_spec:
        key, kw_, kb_ = jax.random.split(key, 3)
        fan_in = c * k * k
        w = jax.random.normal(kw_, (out_c, c, k, k), jnp.float32) / jnp.sqrt(fan_in)
        b = jax.random.normal(kb_, (out_c,), jnp.float32) * 0.01
        p["conv"].append((w, b))
        hw = (hw + 2 * pad - k) // s + 1
        c = out_c
    dim = c * hw * hw + aux_size
    for h in fc_layers:
        key, kw_, kb_ = jax.random.split(key, 3)
        w = jax.random.normal(kw_, (h, dim), jnp.float32) / jnp.sqrt(dim)
        b = jax.random.normal(kb_, (h,), jnp.float32) * 0.01
        p["fc"].append((w, b))
        dim = h
    for name in ("mu", "logvar"):
        key, kw_, kb_ = jax.random.split(key, 3)
        w = jax.random.normal(kw_, (latent_dim, dim), jnp.float32) / jnp.sqrt(dim)
        b = jax.random.normal(kb_, (latent_dim,), jnp.float32) * 0.01
        p[name] = (w, b)
    return p


def torch_reference_forward(tparams, x_nchw, conv_geom, aux=None, *, aux_size=0):
    """Pure-JAX f32 replica of the PyTorch module (NCHW conv, NCHW flatten, separate heads)."""
    if aux_size == 0:
        aux = None
    x = x_nchw
    for (w, b), (_k, s, p) in zip(tparams["conv"], conv_geom):
        x = jax.lax.conv_general_dilated(
            x, w, window_strides=(s, s), padding=[(p, p), (p, p)],
            dimension_numbers=("NCHW", "OIHW", "NCHW"))
        x = jnp.maximum(x + b.reshape(1, -1, 1, 1), 0.0)
    emb = x.reshape(x.shape[0], -1)                    # torch.flatten(x, 1)
    if aux is not None:
        emb = jnp.concatenate([emb, aux], axis=-1)
    for (w, b) in tparams["fc"]:
        emb = jnp.maximum(emb @ w.T + b, 0.0)
    mu = emb @ tparams["mu"][0].T + tparams["mu"][1]
    logvar = emb @ tparams["logvar"][0].T + tparams["logvar"][1]
    return mu, logvar


# ----------------------------------------------------------------------------
# Torch layout -> kernel layout (done ONCE at init): bf16 cast, (kh,kw,c) im2col row
# order, 128-padded outputs, first-FC rows permuted to NHWC flatten, fused heads.
# ----------------------------------------------------------------------------
def _round_up(x, m):
    return ((x + m - 1) // m) * m


def convert_params(tparams, conv_geom, img_size, latent_dim, aux_size):
    assert tparams["fc"], "expected at least one FC layer"
    out = {"conv": [], "fc": []}

    hw = img_size
    in_c_pad = tparams["conv"][0][0].shape[1]          # raw input channels (not padded)
    c_real = in_c_pad
    for (w, b), (k, s, p) in zip(tparams["conv"], conv_geom):
        out_c, in_c = w.shape[0], w.shape[1]
        out_c_pad = _round_up(out_c, LANE)
        w4 = jnp.zeros((k, k, in_c_pad, out_c_pad), jnp.float32)
        w4 = w4.at[:, :, :in_c, :out_c].set(jnp.transpose(w, (2, 3, 1, 0)))
        bp = jnp.zeros((out_c_pad,), jnp.float32).at[:out_c].set(b)
        out["conv"].append(
            (w4.reshape(k * k * in_c_pad, out_c_pad).astype(jnp.bfloat16), bp))
        hw = (hw + 2 * p - k) // s + 1
        in_c_pad, c_real = out_c_pad, out_c

    c_pad = in_c_pad
    cnn_out_real = c_real * hw * hw
    prev_pad = hw * hw * c_pad + aux_size
    for li, (w, b) in enumerate(tparams["fc"]):
        out_f, in_f = w.shape
        out_pad = _round_up(out_f, LANE)
        if li == 0:
            # Columns of the torch weight are in NCHW-flatten order (c, h, w); permute the
            # rows of the kernel weight to the padded NHWC-flatten order (h, w, c_pad).
            w_cnn = w[:, :cnn_out_real]
            w_aux = w[:, cnn_out_real:]
            w4 = jnp.zeros((hw, hw, c_pad, out_pad), jnp.float32)
            w4 = w4.at[:, :, :c_real, :out_f].set(
                jnp.transpose(w_cnn.reshape(out_f, c_real, hw, hw), (2, 3, 1, 0)))
            rows = [w4.reshape(hw * hw * c_pad, out_pad)]
            if aux_size:
                rows.append(jnp.zeros((aux_size, out_pad), jnp.float32)
                            .at[:, :out_f].set(w_aux.T))
            wp = jnp.concatenate(rows, axis=0) if len(rows) > 1 else rows[0]
        else:
            wp = jnp.zeros((prev_pad, out_pad), jnp.float32).at[:in_f, :out_f].set(w.T)
        bp = jnp.zeros((out_pad,), jnp.float32).at[:out_f].set(b)
        out["fc"].append((wp.astype(jnp.bfloat16), bp))
        prev_pad = out_pad

    # Fused mu/logvar head, zero-padded to one 128-lane tile.
    w_mu, b_mu = tparams["mu"]
    w_lv, b_lv = tparams["logvar"]
    in_f = w_mu.shape[1]
    n_head = _round_up(2 * latent_dim, LANE)
    wh = (jnp.zeros((prev_pad, n_head), jnp.float32)
          .at[:in_f, :latent_dim].set(w_mu.T)
          .at[:in_f, latent_dim:2 * latent_dim].set(w_lv.T))
    bh = (jnp.zeros((n_head,), jnp.float32)
          .at[:latent_dim].set(b_mu)
          .at[latent_dim:2 * latent_dim].set(b_lv))
    out["heads"] = (wh.astype(jnp.bfloat16), bh)
    return out


# ----------------------------------------------------------------------------
if __name__ == "__main__":
    key = jax.random.PRNGKey(0)
    kp, kx = jax.random.split(key)

    # ConvEncoder(in_channels=4, img_size=16, conv_layers=[(8,3,2,1),(16,3,2,1)],
    #             fc_layers=[32], latent_dim=8, aux_size=0)
    in_channels, img_size, latent_dim = 4, 16, 8
    conv_spec = ((8, 3, 2, 1), (16, 3, 2, 1))          # (out_c, kernel, stride, pad)
    fc_layers = (32,)
    aux_size = 0
    conv_geom = tuple((k, s, p) for (_, k, s, p) in conv_spec)

    tparams = init_torch_params(kp, in_channels, img_size, conv_spec, fc_layers,
                                latent_dim, aux_size)
    params = convert_params(tparams, conv_geom, img_size, latent_dim, aux_size)

    x = jax.random.normal(kx, (2, in_channels, img_size, img_size), jnp.float32)  # NCHW

    fwd = jax.jit(functools.partial(
        conv_encoder_forward, conv_geom=conv_geom, aux_size=aux_size,
        latent_dim=latent_dim, use_pallas=True))
    mu, logvar = fwd(params, x)
    mu = jax.block_until_ready(mu)
    logvar = jax.block_until_ready(logvar)
    assert mu.shape == (2, latent_dim) and logvar.shape == (2, latent_dim)

    # Check 1: identical-math JAX path (same padded bf16 weights) -> validates the kernel.
    mu_j, lv_j = conv_encoder_forward(params, x, conv_geom, aux_size=aux_size,
                                      latent_dim=latent_dim, use_pallas=False)
    assert jnp.allclose(mu, mu_j, atol=1e-2, rtol=1e-2)
    assert jnp.allclose(logvar, lv_j, atol=1e-2, rtol=1e-2)

    # Check 2: torch-semantics f32 reference (lax.conv NCHW, NCHW flatten, separate heads)
    # -> validates the layout conversion, channel padding and fused heads (bf16 tolerance).
    mu_t, lv_t = torch_reference_forward(tparams, x, conv_geom, aux=None, aux_size=aux_size)
    assert jnp.allclose(mu, mu_t, atol=1e-1, rtol=1e-1)
    assert jnp.allclose(logvar, lv_t, atol=1e-1, rtol=1e-1)

    print("KERNEL_OK")
</pallas_src>

<mosaic_0001>
module attributes {stable_mosaic.version = 11 : i64} {
  func.func @_matmul_bias_act_kernel(%arg0: i32, %arg1: i32, %arg2: i32, %arg3: memref<128x36xbf16, #tpu.memory_space<vmem>>, %arg4: memref<36x128xbf16, #tpu.memory_space<vmem>>, %arg5: memref<1x128xf32, #tpu.memory_space<vmem>>, %arg6: memref<128x128xbf16, #tpu.memory_space<vmem>>, %arg7: memref<128x128xf32, #tpu.memory_space<vmem>>) attributes {dimension_semantics = [#tpu.dimension_semantics<parallel>, #tpu.dimension_semantics<parallel>, #tpu.dimension_semantics<arbitrary>], iteration_bounds = array<i64: 1, 1, 1>, scalar_prefetch = 0 : i64, scratch_operands = 1 : i64, tpu.core_type = #tpu.core_type<tc>, window_params = [{transform_indices = @transform_0, window_bounds = array<i64: 128, 36>}, {transform_indices = @transform_1, window_bounds = array<i64: 36, 128>}, {transform_indices = @transform_2, window_bounds = array<i64: 1, 128>}, {transform_indices = @transform_3, window_bounds = array<i64: 128, 128>}]} {
    %c0_i32 = arith.constant 0 : i32
    %0 = arith.cmpi eq, %arg2, %c0_i32 : i32
    %1 = arith.extui %0 : i1 to i32
    %c0_i32_0 = arith.constant 0 : i32
    %2 = arith.cmpi ne, %1, %c0_i32_0 : i32
    scf.if %2 {
      %cst_10 = arith.constant 0.000000e+00 : f32
      %12 = vector.broadcast %cst_10 : f32 to vector<128x128xf32>
      %c0_11 = arith.constant 0 : index
      %c0_12 = arith.constant 0 : index
      %13 = vector.load %arg7[%c0_11, %c0_12] : memref<128x128xf32, #tpu.memory_space<vmem>>, vector<128x128xf32>
      tpu.vector_store %arg7[%c0_11, %c0_12], %12 {strides = array<i32>} : memref<128x128xf32, #tpu.memory_space<vmem>>, vector<128x128xf32>,
    } else {
    }
    %c0 = arith.constant 0 : index
    %c0_1 = arith.constant 0 : index
    %3 = vector.load %arg7[%c0, %c0_1] : memref<128x128xf32, #tpu.memory_space<vmem>>, vector<128x128xf32>
    %c0_2 = arith.constant 0 : index
    %c0_3 = arith.constant 0 : index
    %4 = vector.load %arg3[%c0_2, %c0_3] : memref<128x36xbf16, #tpu.memory_space<vmem>>, vector<128x36xbf16>
    %c0_4 = arith.constant 0 : index
    %c0_5 = arith.constant 0 : index
    %5 = vector.load %arg4[%c0_4, %c0_5] : memref<36x128xbf16, #tpu.memory_space<vmem>>, vector<36x128xbf16>
    %cst = arith.constant dense<0.000000e+00> : vector<128x128xf32>
    %6 = tpu.matmul %4, %5, %cst {dimension_numbers = #tpu.dot_dimension_numbers<[1], [0], [0], [1], [0, 0, 1, 1], [], []>} : vector<128x36xbf16>, vector<36x128xbf16>, vector<128x128xf32> -> vector<128x128xf32>
    %7 = arith.addf %3, %6 : vector<128x128xf32>
    %c0_6 = arith.constant 0 : index
    %c0_7 = arith.constant 0 : index
    %8 = vector.load %arg7[%c0_6, %c0_7] : memref<128x128xf32, #tpu.memory_space<vmem>>, vector<128x128xf32>
    tpu.vector_store %arg7[%c0_6, %c0_7], %7 {strides = array<i32>} : memref<128x128xf32, #tpu.memory_space<vmem>>, vector<128x128xf32>,
    %c0_i32_8 = arith.constant 0 : i32
    %9 = arith.cmpi eq, %arg2, %c0_i32_8 : i32
    %10 = arith.extui %9 : i1 to i32
    %c0_i32_9 = arith.constant 0 : i32
    %11 = arith.cmpi ne, %10, %c0_i32_9 : i32
    scf.if %11 {
      %c0_10 = arith.constant 0 : index
      %c0_11 = arith.constant 0 : index
      %12 = vector.load %arg7[%c0_10, %c0_11] : memref<128x128xf32, #tpu.memory_space<vmem>>, vector<128x128xf32>
      %c0_12 = arith.constant 0 : index
      %c0_13 = arith.constant 0 : index
      %13 = vector.load %arg5[%c0_12, %c0_13] : memref<1x128xf32, #tpu.memory_space<vmem>>, vector<1x128xf32>
      %14 = vector.broadcast %13 : vector<1x128xf32> to vector<128x128xf32>
      %15 = arith.addf %12, %14 : vector<128x128xf32>
      %cst_14 = arith.constant 0.000000e+00 : f32
      %16 = vector.broadcast %cst_14 : f32 to vector<128x128xf32>
      %17 = arith.maximumf %15, %16 : vector<128x128xf32>
      %18 = arith.truncf %17 : vector<128x128xf32> to vector<128x128xbf16>
      %c0_15 = arith.constant 0 : index
      %c0_16 = arith.constant 0 : index
      %19 = vector.load %arg6[%c0_15, %c0_16] : memref<128x128xbf16, #tpu.memory_space<vmem>>, vector<128x128xbf16>
      tpu.vector_store %arg6[%c0_15, %c0_16], %18 {strides = array<i32>} : memref<128x128xbf16, #tpu.memory_space<vmem>>, vector<128x128xbf16>,
    } else {
    }
    return
  }
  func.func @transform_0(%arg0: i32, %arg1: i32, %arg2: i32) -> (i32, i32) {
    %c0_i32 = arith.constant 0 : i32
    return %arg0, %arg2 : i32, i32
  }
  func.func @transform_1(%arg0: i32, %arg1: i32, %arg2: i32) -> (i32, i32) {
    %c0_i32 = arith.constant 0 : i32
    return %arg2, %arg1 : i32, i32
  }
  func.func @transform_2(%arg0: i32, %arg1: i32, %arg2: i32) -> (i32, i32) {
    %c0_i32 = arith.constant 0 : i32
    %c0_i32_0 = arith.constant 0 : i32
    return %c0_i32, %arg1 : i32, i32
  }
  func.func @transform_3(%arg0: i32, %arg1: i32, %arg2: i32) -> (i32, i32) {
    %c0_i32 = arith.constant 0 : i32
    return %arg0, %arg1 : i32, i32
  }
}

module attributes {stable_mosaic.version = 11 : i64} {
  func.func @_matmul_bias_act_kernel(%arg0: i32, %arg1: i32, %arg2: i32, %arg3: memref<32x128xbf16, #tpu.memory_space<vmem>>, %arg4: memref<128x128xbf16, #tpu.memory_space<vmem>>, %arg5: memref<1x128xf32, #tpu.memory_space<vmem>>, %arg6: memref<32x128xbf16, #tpu.memory_space<vmem>>, %arg7: memref<32x128xf32, #tpu.memory_space<vmem>>) attributes {dimension_semantics = [#tpu.dimension_semantics<parallel>, #tpu.dimension_semantics<parallel>, #tpu.dimension_semantics<arbitrary>], iteration_bounds = array<i64: 1, 1, 9>, scalar_prefetch = 0 : i64, scratch_operands = 1 : i64, tpu.core_type = #tpu.core_type<tc>, window_params = [{transform_indices = @transform_0, window_bounds = array<i64: 32, 128>}, {transform_indices = @transform_1, window_bounds = array<i64: 128, 128>}, {transform_indices = @transform_2, window_bounds = array<i64: 1, 128>}, {transform_indices = @transform_3, window_bounds = array<i64: 32, 128>}]} {
    %c0_i32 = arith.constant 0 : i32
    %0 = arith.cmpi eq, %arg2, %c0_i32 : i32
    %1 = arith.extui %0 : i1 to i32
    %c0_i32_0 = arith.constant 0 : i32
    %2 = arith.cmpi ne, %1, %c0_i32_0 : i32
    scf.if %2 {
      %cst_9 = arith.constant 0.000000e+00 : f32
      %12 = vector.broadcast %cst_9 : f32 to vector<32x128xf32>
      %c0_10 = arith.constant 0 : index
      %c0_11 = arith.constant 0 : index
      %13 = vector.load %arg7[%c0_10, %c0_11] : memref<32x128xf32, #tpu.memory_space<vmem>>, vector<32x128xf32>
      tpu.vector_store %arg7[%c0_10, %c0_11], %12 {strides = array<i32>} : memref<32x128xf32, #tpu.memory_space<vmem>>, vector<32x128xf32>,
    } else {
    }
    %c0 = arith.constant 0 : index
    %c0_1 = arith.constant 0 : index
    %3 = vector.load %arg7[%c0, %c0_1] : memref<32x128xf32, #tpu.memory_space<vmem>>, vector<32x128xf32>
    %c0_2 = arith.constant 0 : index
    %c0_3 = arith.constant 0 : index
    %4 = vector.load %arg3[%c0_2, %c0_3] : memref<32x128xbf16, #tpu.memory_space<vmem>>, vector<32x128xbf16>
    %c0_4 = arith.constant 0 : index
    %c0_5 = arith.constant 0 : index
    %5 = vector.load %arg4[%c0_4, %c0_5] : memref<128x128xbf16, #tpu.memory_space<vmem>>, vector<128x128xbf16>
    %cst = arith.constant dense<0.000000e+00> : vector<32x128xf32>
    %6 = tpu.matmul %4, %5, %cst {dimension_numbers = #tpu.dot_dimension_numbers<[1], [0], [0], [1], [0, 0, 1, 1], [], []>} : vector<32x128xbf16>, vector<128x128xbf16>, vector<32x128xf32> -> vector<32x128xf32>
    %7 = arith.addf %3, %6 : vector<32x128xf32>
    %c0_6 = arith.constant 0 : index
    %c0_7 = arith.constant 0 : index
    %8 = vector.load %arg7[%c0_6, %c0_7] : memref<32x128xf32, #tpu.memory_space<vmem>>, vector<32x128xf32>
    tpu.vector_store %arg7[%c0_6, %c0_7], %7 {strides = array<i32>} : memref<32x128xf32, #tpu.memory_space<vmem>>, vector<32x128xf32>,
    %c8_i32 = arith.constant 8 : i32
    %9 = arith.cmpi eq, %arg2, %c8_i32 : i32
    %10 = arith.extui %9 : i1 to i32
    %c0_i32_8 = arith.constant 0 : i32
    %11 = arith.cmpi ne, %10, %c0_i32_8 : i32
    scf.if %11 {
      %c0_9 = arith.constant 0 : index
      %c0_10 = arith.constant 0 : index
      %12 = vector.load %arg7[%c0_9, %c0_10] : memref<32x128xf32, #tpu.memory_space<vmem>>, vector<32x128xf32>
      %c0_11 = arith.constant 0 : index
      %c0_12 = arith.constant 0 : index
      %13 = vector.load %arg5[%c0_11, %c0_12] : memref<1x128xf32, #tpu.memory_space<vmem>>, vector<1x128xf32>
      %14 = vector.broadcast %13 : vector<1x128xf32> to vector<32x128xf32>
      %15 = arith.addf %12, %14 : vector<32x128xf32>
      %cst_13 = arith.constant 0.000000e+00 : f32
      %16 = vector.broadcast %cst_13 : f32 to vector<32x128xf32>
      %17 = arith.maximumf %15, %16 : vector<32x128xf32>
      %18 = arith.truncf %17 : vector<32x128xf32> to vector<32x128xbf16>
      %c0_14 = arith.constant 0 : index
      %c0_15 = arith.constant 0 : index
      %19 = vector.load %arg6[%c0_14, %c0_15] : memref<32x128xbf16, #tpu.memory_space<vmem>>, vector<32x128xbf16>
      tpu.vector_store %arg6[%c0_14, %c0_15], %18 {strides = array<i32>} : memref<32x128xbf16, #tpu.memory_space<vmem>>, vector<32x128xbf16>,
    } else {
    }
    return
  }
  func.func @transform_0(%arg0: i32, %arg1: i32, %arg2: i32) -> (i32, i32) {
    %c0_i32 = arith.constant 0 : i32
    return %arg0, %arg2 : i32, i32
  }
  func.func @transform_1(%arg0: i32, %arg1: i32, %arg2: i32) -> (i32, i32) {
    %c0_i32 = arith.constant 0 : i32
    return %arg2, %arg1 : i32, i32
  }
  func.func @transform_2(%arg0: i32, %arg1: i32, %arg2: i32) -> (i32, i32) {
    %c0_i32 = arith.constant 0 : i32
    %c0_i32_0 = arith.constant 0 : i32
    return %c0_i32, %arg1 : i32, i32
  }
  func.func @transform_3(%arg0: i32, %arg1: i32, %arg2: i32) -> (i32, i32) {
    %c0_i32 = arith.constant 0 : i32
    return %arg0, %arg1 : i32, i32
  }
}

module attributes {stable_mosaic.version = 11 : i64} {
  func.func @_matmul_bias_act_kernel(%arg0: i32, %arg1: i32, %arg2: i32, %arg3: memref<2x512xbf16, #tpu.memory_space<vmem>>, %arg4: memref<512x128xbf16, #tpu.memory_space<vmem>>, %arg5: memref<1x128xf32, #tpu.memory_space<vmem>>, %arg6: memref<2x128xbf16, #tpu.memory_space<vmem>>, %arg7: memref<2x128xf32, #tpu.memory_space<vmem>>) attributes {dimension_semantics = [#tpu.dimension_semantics<parallel>, #tpu.dimension_semantics<parallel>, #tpu.dimension_semantics<arbitrary>], iteration_bounds = array<i64: 1, 1, 4>, scalar_prefetch = 0 : i64, scratch_operands = 1 : i64, tpu.core_type = #tpu.core_type<tc>, window_params = [{transform_indices = @transform_0, window_bounds = array<i64: 2, 512>}, {transform_indices = @transform_1, window_bounds = array<i64: 512, 128>}, {transform_indices = @transform_2, window_bounds = array<i64: 1, 128>}, {transform_indices = @transform_3, window_bounds = array<i64: 2, 128>}]} {
    %c0_i32 = arith.constant 0 : i32
    %0 = arith.cmpi eq, %arg2, %c0_i32 : i32
    %1 = arith.extui %0 : i1 to i32
    %c0_i32_0 = arith.constant 0 : i32
    %2 = arith.cmpi ne, %1, %c0_i32_0 : i32
    scf.if %2 {
      %cst_9 = arith.constant 0.000000e+00 : f32
      %12 = vector.broadcast %cst_9 : f32 to vector<2x128xf32>
      %c0_10 = arith.constant 0 : index
      %c0_11 = arith.constant 0 : index
      %13 = vector.load %arg7[%c0_10, %c0_11] : memref<2x128xf32, #tpu.memory_space<vmem>>, vector<2x128xf32>
      tpu.vector_store %arg7[%c0_10, %c0_11], %12 {strides = array<i32>} : memref<2x128xf32, #tpu.memory_space<vmem>>, vector<2x128xf32>,
    } else {
    }
    %c0 = arith.constant 0 : index
    %c0_1 = arith.constant 0 : index
    %3 = vector.load %arg7[%c0, %c0_1] : memref<2x128xf32, #tpu.memory_space<vmem>>, vector<2x128xf32>
    %c0_2 = arith.constant 0 : index
    %c0_3 = arith.constant 0 : index
    %4 = vector.load %arg3[%c0_2, %c0_3] : memref<2x512xbf16, #tpu.memory_space<vmem>>, vector<2x512xbf16>
    %c0_4 = arith.constant 0 : index
    %c0_5 = arith.constant 0 : index
    %5 = vector.load %arg4[%c0_4, %c0_5] : memref<512x128xbf16, #tpu.memory_space<vmem>>, vector<512x128xbf16>
    %cst = arith.constant dense<0.000000e+00> : vector<2x128xf32>
    %6 = tpu.matmul %4, %5, %cst {dimension_numbers = #tpu.dot_dimension_numbers<[1], [0], [0], [1], [0, 0, 1, 1], [], []>} : vector<2x512xbf16>, vector<512x128xbf16>, vector<2x128xf32> -> vector<2x128xf32>
    %7 = arith.addf %3, %6 : vector<2x128xf32>
    %c0_6 = arith.constant 0 : index
    %c0_7 = arith.constant 0 : index
    %8 = vector.load %arg7[%c0_6, %c0_7] : memref<2x128xf32, #tpu.memory_space<vmem>>, vector<2x128xf32>
    tpu.vector_store %arg7[%c0_6, %c0_7], %7 {strides = array<i32>} : memref<2x128xf32, #tpu.memory_space<vmem>>, vector<2x128xf32>,
    %c3_i32 = arith.constant 3 : i32
    %9 = arith.cmpi eq, %arg2, %c3_i32 : i32
    %10 = arith.extui %9 : i1 to i32
    %c0_i32_8 = arith.constant 0 : i32
    %11 = arith.cmpi ne, %10, %c0_i32_8 : i32
    scf.if %11 {
      %c0_9 = arith.constant 0 : index
      %c0_10 = arith.constant 0 : index
      %12 = vector.load %arg7[%c0_9, %c0_10] : memref<2x128xf32, #tpu.memory_space<vmem>>, vector<2x128xf32>
      %c0_11 = arith.constant 0 : index
      %c0_12 = arith.constant 0 : index
      %13 = vector.load %arg5[%c0_11, %c0_12] : memref<1x128xf32, #tpu.memory_space<vmem>>, vector<1x128xf32>
      %14 = vector.broadcast %13 : vector<1x128xf32> to vector<2x128xf32>
      %15 = arith.addf %12, %14 : vector<2x128xf32>
      %cst_13 = arith.constant 0.000000e+00 : f32
      %16 = vector.broadcast %cst_13 : f32 to vector<2x128xf32>
      %17 = arith.maximumf %15, %16 : vector<2x128xf32>
      %18 = arith.truncf %17 : vector<2x128xf32> to vector<2x128xbf16>
      %c0_14 = arith.constant 0 : index
      %c0_15 = arith.constant 0 : index
      %19 = vector.load %arg6[%c0_14, %c0_15] : memref<2x128xbf16, #tpu.memory_space<vmem>>, vector<2x128xbf16>
      tpu.vector_store %arg6[%c0_14, %c0_15], %18 {strides = array<i32>} : memref<2x128xbf16, #tpu.memory_space<vmem>>, vector<2x128xbf16>,
    } else {
    }
    return
  }
  func.func @transform_0(%arg0: i32, %arg1: i32, %arg2: i32) -> (i32, i32) {
    %c0_i32 = arith.constant 0 : i32
    return %arg0, %arg2 : i32, i32
  }
  func.func @transform_1(%arg0: i32, %arg1: i32, %arg2: i32) -> (i32, i32) {
    %c0_i32 = arith.constant 0 : i32
    return %arg2, %arg1 : i32, i32
  }
  func.func @transform_2(%arg0: i32, %arg1: i32, %arg2: i32) -> (i32, i32) {
    %c0_i32 = arith.constant 0 : i32
    %c0_i32_0 = arith.constant 0 : i32
    return %c0_i32, %arg1 : i32, i32
  }
  func.func @transform_3(%arg0: i32, %arg1: i32, %arg2: i32) -> (i32, i32) {
    %c0_i32 = arith.constant 0 : i32
    return %arg0, %arg1 : i32, i32
  }
}

module attributes {stable_mosaic.version = 11 : i64} {
  func.func @_matmul_bias_act_kernel(%arg0: i32, %arg1: i32, %arg2: i32, %arg3: memref<2x128xbf16, #tpu.memory_space<vmem>>, %arg4: memref<128x128xbf16, #tpu.memory_space<vmem>>, %arg5: memref<1x128xf32, #tpu.memory_space<vmem>>, %arg6: memref<2x128xf32, #tpu.memory_space<vmem>>, %arg7: memref<2x128xf32, #tpu.memory_space<vmem>>) attributes {dimension_semantics = [#tpu.dimension_semantics<parallel>, #tpu.dimension_semantics<parallel>, #tpu.dimension_semantics<arbitrary>], iteration_bounds = array<i64: 1, 1, 1>, scalar_prefetch = 0 : i64, scratch_operands = 1 : i64, tpu.core_type = #tpu.core_type<tc>, window_params = [{transform_indices = @transform_0, window_bounds = array<i64: 2, 128>}, {transform_indices = @transform_1, window_bounds = array<i64: 128, 128>}, {transform_indices = @transform_2, window_bounds = array<i64: 1, 128>}, {transform_indices = @transform_3, window_bounds = array<i64: 2, 128>}]} {
    %c0_i32 = arith.constant 0 : i32
    %0 = arith.cmpi eq, %arg2, %c0_i32 : i32
    %1 = arith.extui %0 : i1 to i32
    %c0_i32_0 = arith.constant 0 : i32
    %2 = arith.cmpi ne, %1, %c0_i32_0 : i32
    scf.if %2 {
      %cst_10 = arith.constant 0.000000e+00 : f32
      %12 = vector.broadcast %cst_10 : f32 to vector<2x128xf32>
      %c0_11 = arith.constant 0 : index
      %c0_12 = arith.constant 0 : index
      %13 = vector.load %arg7[%c0_11, %c0_12] : memref<2x128xf32, #tpu.memory_space<vmem>>, vector<2x128xf32>
      tpu.vector_store %arg7[%c0_11, %c0_12], %12 {strides = array<i32>} : memref<2x128xf32, #tpu.memory_space<vmem>>, vector<2x128xf32>,
    } else {
    }
    %c0 = arith.constant 0 : index
    %c0_1 = arith.constant 0 : index
    %3 = vector.load %arg7[%c0, %c0_1] : memref<2x128xf32, #tpu.memory_space<vmem>>, vector<2x128xf32>
    %c0_2 = arith.constant 0 : index
    %c0_3 = arith.constant 0 : index
    %4 = vector.load %arg3[%c0_2, %c0_3] : memref<2x128xbf16, #tpu.memory_space<vmem>>, vector<2x128xbf16>
    %c0_4 = arith.constant 0 : index
    %c0_5 = arith.constant 0 : index
    %5 = vector.load %arg4[%c0_4, %c0_5] : memref<128x128xbf16, #tpu.memory_space<vmem>>, vector<128x128xbf16>
    %cst = arith.constant dense<0.000000e+00> : vector<2x128xf32>
    %6 = tpu.matmul %4, %5, %cst {dimension_numbers = #tpu.dot_dimension_numbers<[1], [0], [0], [1], [0, 0, 1, 1], [], []>} : vector<2x128xbf16>, vector<128x128xbf16>, vector<2x128xf32> -> vector<2x128xf32>
    %7 = arith.addf %3, %6 : vector<2x128xf32>
    %c0_6 = arith.constant 0 : index
    %c0_7 = arith.constant 0 : index
    %8 = vector.load %arg7[%c0_6, %c0_7] : memref<2x128xf32, #tpu.memory_space<vmem>>, vector<2x128xf32>
    tpu.vector_store %arg7[%c0_6, %c0_7], %7 {strides = array<i32>} : memref<2x128xf32, #tpu.memory_space<vmem>>, vector<2x128xf32>,
    %c0_i32_8 = arith.constant 0 : i32
    %9 = arith.cmpi eq, %arg2, %c0_i32_8 : i32
    %10 = arith.extui %9 : i1 to i32
    %c0_i32_9 = arith.constant 0 : i32
    %11 = arith.cmpi ne, %10, %c0_i32_9 : i32
    scf.if %11 {
      %c0_10 = arith.constant 0 : index
      %c0_11 = arith.constant 0 : index
      %12 = vector.load %arg7[%c0_10, %c0_11] : memref<2x128xf32, #tpu.memory_space<vmem>>, vector<2x128xf32>
      %c0_12 = arith.constant 0 : index
      %c0_13 = arith.constant 0 : index
      %13 = vector.load %arg5[%c0_12, %c0_13] : memref<1x128xf32, #tpu.memory_space<vmem>>, vector<1x128xf32>
      %14 = vector.broadcast %13 : vector<1x128xf32> to vector<2x128xf32>
      %15 = arith.addf %12, %14 : vector<2x128xf32>
      %c0_14 = arith.constant 0 : index
      %c0_15 = arith.constant 0 : index
      %16 = vector.load %arg6[%c0_14, %c0_15] : memref<2x128xf32, #tpu.memory_space<vmem>>, vector<2x128xf32>
      tpu.vector_store %arg6[%c0_14, %c0_15], %15 {strides = array<i32>} : memref<2x128xf32, #tpu.memory_space<vmem>>, vector<2x128xf32>,
    } else {
    }
    return
  }
  func.func @transform_0(%arg0: i32, %arg1: i32, %arg2: i32) -> (i32, i32) {
    %c0_i32 = arith.constant 0 : i32
    return %arg0, %arg2 : i32, i32
  }
  func.func @transform_1(%arg0: i32, %arg1: i32, %arg2: i32) -> (i32, i32) {
    %c0_i32 = arith.constant 0 : i32
    return %arg2, %arg1 : i32, i32
  }
  func.func @transform_2(%arg0: i32, %arg1: i32, %arg2: i32) -> (i32, i32) {
    %c0_i32 = arith.constant 0 : i32
    %c0_i32_0 = arith.constant 0 : i32
    return %c0_i32, %arg1 : i32, i32
  }
  func.func @transform_3(%arg0: i32, %arg1: i32, %arg2: i32) -> (i32, i32) {
    %c0_i32 = arith.constant 0 : i32
    return %arg0, %arg1 : i32, i32
  }
}

</mosaic_0001>

<llo_original>
// kernel: conv_encoder_forward.4
$region0: #{conv_encoder_forward.4}
  #allocation0 [shape = 'u32[]', space=smem, size = 0x4, offset = 0x4, fixed_abs, tag = 'smem constant byte address 0x4 - core index']
  #allocation1 [shape = 'u32[144,128]{1,0:T(1,128)}', space=vmem, size = 0x12000, scoped, tag = 'internal scratch']
  #allocation2 [shape = 'f32[128,128]{1,0:T(8,128)}', space=vmem, size = 0x10000, scoped, tag = 'scratch operand']
  %s0 = inlined_call_operand.vmem [shape: bf16[128,36], index: 0, kind: input, shape index: {}]
  %s1 = inlined_call_operand.vmem [shape: bf16[36,128], index: 1, kind: input, shape index: {}]
  %s2 = inlined_call_operand.vmem [shape: f32[1,128], index: 2, kind: input, shape index: {}]
  %s3 = inlined_call_operand.vmem [shape: bf16[128,128], index: 3, kind: output, shape index: {}]
  %s4 = sld [smem:[#allocation0]]
  $region30: #{conv_encoder_forward.4} parent=0
    _
  %s6 = ssub.s32 1, %s4
  %s7 = scalar_select 0, %s6, %s4
  // Predicated region
  $region2: #{conv_encoder_forward.4} parent=0 // pred_check
    _
  $region3: #{conv_encoder_forward.4} parent=0 // pred_check_branch
    %9 = sbr.rel (0) target = $region5
  $region4: #{conv_encoder_forward.4} parent=0 // pred_region
    _
  $region5: #{conv_encoder_forward.4} parent=0 // pred_fallthru
    _
  // Predicated region
  $region6: #{conv_encoder_forward.4} parent=0 // pred_check
    _
  $region7: #{conv_encoder_forward.4} parent=0 // pred_check_branch
    %11 = sbr.rel (0) target = $region9
  $region8: #{conv_encoder_forward.4} parent=0 // pred_region
    _
  $region9: #{conv_encoder_forward.4} parent=0 // pred_fallthru
    _
  // Predicated region
  $region10: #{conv_encoder_forward.4} parent=0 // pred_check
    _
  $region11: #{conv_encoder_forward.4} parent=0 // pred_check_branch
    %13 = sbr.rel (0) target = $region13
  $region12: #{conv_encoder_forward.4} parent=0 // pred_region
    _
  $region13: #{conv_encoder_forward.4} parent=0 // pred_fallthru
    _
  %p15 = scmp.eq.s32.totalorder 0, 0
  // Predicated region
  $region14: #{conv_encoder_forward.4} parent=0 // pred_check
    %p16 = pneg %p15
  $region15: #{conv_encoder_forward.4} parent=0 // pred_check_branch
    %18 = sbr.rel (%p16) target = $region17
  $region16: #{conv_encoder_forward.4} parent=0 // pred_region
    %19 = vst [vmem:[#allocation2] sm:$0xff] 0.0
    %20 = vst [vmem:[#allocation2 + $0x8] sm:$0xff] 0.0
    %21 = vst [vmem:[#allocation2 + $0x10] sm:$0xff] 0.0
    %22 = vst [vmem:[#allocation2 + $0x18] sm:$0xff] 0.0
    %23 = vst [vmem:[#allocation2 + $0x20] sm:$0xff] 0.0
    %24 = vst [vmem:[#allocation2 + $0x28] sm:$0xff] 0.0
    %25 = vst [vmem:[#allocation2 + $0x30] sm:$0xff] 0.0
    %26 = vst [vmem:[#allocation2 + $0x38] sm:$0xff] 0.0
    %27 = vst [vmem:[#allocation2 + $0x40] sm:$0xff] 0.0
    %28 = vst [vmem:[#allocation2 + $0x48] sm:$0xff] 0.0
    %29 = vst [vmem:[#allocation2 + $0x50] sm:$0xff] 0.0
    %30 = vst [vmem:[#allocation2 + $0x58] sm:$0xff] 0.0
    %31 = vst [vmem:[#allocation2 + $0x60] sm:$0xff] 0.0
    %32 = vst [vmem:[#allocation2 + $0x68] sm:$0xff] 0.0
    %33 = vst [vmem:[#allocation2 + $0x70] sm:$0xff] 0.0
    %34 = vst [vmem:[#allocation2 + $0x78] sm:$0xff] 0.0
  $region17: #{conv_encoder_forward.4} parent=0 // pred_fallthru
    _
  %v35 = vld [vmem:[#allocation2] sm:$0xff]
  %v36 = vld [vmem:[#allocation2 + $0x8] sm:$0xff]
  %v37 = vld [vmem:[#allocation2 + $0x10] sm:$0xff]
  %v38 = vld [vmem:[#allocation2 + $0x18] sm:$0xff]
  %v39 = vld [vmem:[#allocation2 + $0x20] sm:$0xff]
  %v40 = vld [vmem:[#allocation2 + $0x28] sm:$0xff]
  %v41 = vld [vmem:[#allocation2 + $0x30] sm:$0xff]
  %v42 = vld [vmem:[#allocation2 + $0x38] sm:$0xff]
  %v43 = vld [vmem:[#allocation2 + $0x40] sm:$0xff]
  %v44 = vld [vmem:[#allocation2 + $0x48] sm:$0xff]
  %v45 = vld [vmem:[#allocation2 + $0x50] sm:$0xff]
  %v46 = vld [vmem:[#allocation2 + $0x58] sm:$0xff]
  %v47 = vld [vmem:[#allocation2 + $0x60] sm:$0xff]
  %v48 = vld [vmem:[#allocation2 + $0x68] sm:$0xff]
  %v49 = vld [vmem:[#allocation2 + $0x70] sm:$0xff]
  %v50 = vld [vmem:[#allocation2 + $0x78] sm:$0xff]
  %v51 = vld [vmem:[%s0] sm:$0xf]
  %v52 = vld [vmem:[%s0 + $0x4] sm:$0xf]
  %v53 = vld [vmem:[%s0 + $0x8] sm:$0xf]
  %v54 = vld [vmem:[%s0 + $0xc] sm:$0xf]
  %v55 = vld [vmem:[%s0 + $0x10] sm:$0xf]
  %v56 = vld [vmem:[%s0 + $0x14] sm:$0xf]
  %v57 = vld [vmem:[%s0 + $0x18] sm:$0xf]
  %v58 = vld [vmem:[%s0 + $0x1c] sm:$0xf]
  %v59 = vld [vmem:[%s0 + $0x20] sm:$0xf]
  %v60 = vld [vmem:[%s0 + $0x24] sm:$0xf]
  %v61 = vld [vmem:[%s0 + $0x28] sm:$0xf]
  %v62 = vld [vmem:[%s0 + $0x2c] sm:$0xf]
  %v63 = vld [vmem:[%s0 + $0x30] sm:$0xf]
  %v64 = vld [vmem:[%s0 + $0x34] sm:$0xf]
  %v65 = vld [vmem:[%s0 + $0x38] sm:$0xf]
  %v66 = vld [vmem:[%s0 + $0x3c] sm:$0xf]
  %v67 = vld [vmem:[%s1] sm:$0xf]
  %v68 = vld [vmem:[%s1 + $0x4] sm:$0xf]
  %v69 = vld [vmem:[%s1 + $0x8] sm:$0xf]
  %v70 = vld [vmem:[%s1 + $0xc] sm:$0xf]
  %v71 = vld [vmem:[%s1 + $0x10] sm:$0x3]
  %v88 = vunpack.c.l.b16 %v51
  %v89 = vunpack.c.l.b16 %v52
  %v90 = vunpack.c.l.b16 %v53
  %v91 = vunpack.c.l.b16 %v54
  %v92 = vunpack.c.l.b16 %v55
  %v93 = vunpack.c.l.b16 %v56
  %v94 = vunpack.c.l.b16 %v57
  %v95 = vunpack.c.l.b16 %v58
  %v96 = vunpack.c.l.b16 %v59
  %v97 = vunpack.c.l.b16 %v60
  %v98 = vunpack.c.l.b16 %v61
  %v99 = vunpack.c.l.b16 %v62
  %v100 = vunpack.c.l.b16 %v63
  %v101 = vunpack.c.l.b16 %v64
  %v102 = vunpack.c.l.b16 %v65
  %v103 = vunpack.c.l.b16 %v66
  %v104 = vpack.c.b16 %v89, %v88
  %v105 = vpack.c.b16 %v91, %v90
  %v106 = vpack.c.b16 %v93, %v92
  %v107 = vpack.c.b16 %v95, %v94
  %v108 = vpack.c.b16 %v97, %v96
  %v109 = vpack.c.b16 %v99, %v98
  %v110 = vpack.c.b16 %v101, %v100
  %v111 = vpack.c.b16 %v103, %v102
  %v117 = vunpack.c.l.b16 %v67
  %v118 = vunpack.c.l.b16 %v68
  %v119 = vunpack.c.l.b16 %v69
  %v120 = vunpack.c.l.b16 %v70
  %v121 = vunpack.c.l.b16 %v71
  %v122 = vpack.c.b16 %v118, %v117
  %v123 = vpack.c.b16 %v120, %v119
  %v124 = vpack.c.b16 %v121, %v121
  %vm127 = vcmask 293888
  %v129 = vsel %vm127, %v104, 0
  %v132 = vsel %vm127, %v105, 0
  %v135 = vsel %vm127, %v106, 0
  %v138 = vsel %vm127, %v107, 0
  %v141 = vsel %vm127, %v108, 0
  %v144 = vsel %vm127, %v109, 0
  %v147 = vsel %vm127, %v110, 0
  %v150 = vsel %vm127, %v111, 0
  %vm152 = vcmask 1041408
  %v154 = vsel %vm152, %v124, 0
  %156 = vmatprep.subr.bf16.mxu0 0
  %157 = vmatpush1.bf16.msra.mxu0 %v122
  %158 = vmatprep.subr.bf16.mxu0 0
  %159 = vmatpush1.bf16.msra.mxu0 %v123
  %160 = vmatprep.subr.bf16.mxu0 0
  %161 = vmatpush1.bf16.msra.mxu0 %v154
  %162 = vmatprep.subr.bf16.mxu0 0
  %163 = vmatpush1.bf16.msra.mxu0 0
  %164 = vmatprep.subr.bf16.mxu0 0
  %165 = vmatpush1.bf16.msra.mxu0 0
  %166 = vmatprep.subr.bf16.mxu0 0
  %167 = vmatpush1.bf16.msra.mxu0 0
  %168 = vmatprep.subr.bf16.mxu0 0
  %169 = vmatpush1.bf16.msra.mxu0 0
  %170 = vmatprep.subr.bf16.mxu0 0
  %171 = vmatpush1.bf16.msra.mxu0 0
  %172 = vmatprep.subr.bf16.mxu0 0
  %173 = vmatpush1.bf16.msra.mxu0 0
  %174 = vmatprep.subr.bf16.mxu0 0
  %175 = vmatpush1.bf16.msra.mxu0 0
  %176 = vmatprep.subr.bf16.mxu0 0
  %177 = vmatpush1.bf16.msra.mxu0 0
  %178 = vmatprep.subr.bf16.mxu0 0
  %179 = vmatpush1.bf16.msra.mxu0 0
  %180 = vmatprep.subr.bf16.mxu0 0
  %181 = vmatpush1.bf16.msra.mxu0 0
  %182 = vmatprep.subr.bf16.mxu0 0
  %183 = vmatpush1.bf16.msra.mxu0 0
  %184 = vmatprep.subr.bf16.mxu0 0
  %185 = vmatpush1.bf16.msra.mxu0 0
  %186 = vmatprep.subr.bf16.mxu0 0
  %187 = vmatpush1.bf16.msra.mxu0 0
  %188 = vmatprep.mubr.bf16.mxu0 0
  %189 = vmatmul.mubr.bf16.gmra.mrb[0].mxu0 %v129
  %v190 = vpop.f32.mrb[0].mxu0
  %v191 = vadd.f32 0.0, %v190
  %v192 = vpop.f32.mrb[0].mxu0
  %v193 = vpop.f32.mrb[0].mxu0
  %v194 = vadd.f32 0.0, %v193
  %v195 = vpop.f32.mrb[0].mxu0
  %196 = vmatprep.mubr.bf16.mxu0 0
  %197 = vmatmul.mubr.bf16.gmra.mrb[0].mxu0 %v132
  %v198 = vpop.f32.mrb[0].mxu0
  %v199 = vadd.f32 0.0, %v198
  %v200 = vpop.f32.mrb[0].mxu0
  %v201 = vpop.f32.mrb[0].mxu0
  %v202 = vadd.f32 0.0, %v201
  %v203 = vpop.f32.mrb[0].mxu0
  %204 = vmatprep.mubr.bf16.mxu0 0
  %205 = vmatmul.mubr.bf16.gmra.mrb[0].mxu0 %v135
  %v206 = vpop.f32.mrb[0].mxu0
  %v207 = vadd.f32 0.0, %v206
  %v208 = vpop.f32.mrb[0].mxu0
  %v209 = vpop.f32.mrb[0].mxu0
  %v210 = vadd.f32 0.0, %v209
  %v211 = vpop.f32.mrb[0].mxu0
  %212 = vmatprep.mubr.bf16.mxu0 0
  %213 = vmatmul.mubr.bf16.gmra.mrb[0].mxu0 %v138
  %v214 = vpop.f32.mrb[0].mxu0
  %v215 = vadd.f32 0.0, %v214
  %v216 = vpop.f32.mrb[0].mxu0
  %v217 = vpop.f32.mrb[0].mxu0
  %v218 = vadd.f32 0.0, %v217
  %v219 = vpop.f32.mrb[0].mxu0
  %220 = vmatprep.mubr.bf16.mxu0 0
  %221 = vmatmul.mubr.bf16.gmra.mrb[0].mxu0 %v141
  %v222 = vpop.f32.mrb[0].mxu0
  %v223 = vadd.f32 0.0, %v222
  %v224 = vpop.f32.mrb[0].mxu0
  %v225 = vpop.f32.mrb[0].mxu0
  %v226 = vadd.f32 0.0, %v225
  %v227 = vpop.f32.mrb[0].mxu0
  %228 = vmatprep.mubr.bf16.mxu0 0
  %229 = vmatmul.mubr.bf16.gmra.mrb[0].mxu0 %v144
  %v230 = vpop.f32.mrb[0].mxu0
  %v231 = vadd.f32 0.0, %v230
  %v232 = vpop.f32.mrb[0].mxu0
  %v233 = vpop.f32.mrb[0].mxu0
  %v234 = vadd.f32 0.0, %v233
  %v235 = vpop.f32.mrb[0].mxu0
  %236 = vmatprep.mubr.bf16.mxu0 0
  %237 = vmatmul.mubr.bf16.gmra.mrb[0].mxu0 %v147
  %v238 = vpop.f32.mrb[0].mxu0
  %v239 = vadd.f32 0.0, %v238
  %v240 = vpop.f32.mrb[0].mxu0
  %v241 = vpop.f32.mrb[0].mxu0
  %v242 = vadd.f32 0.0, %v241
  %v243 = vpop.f32.mrb[0].mxu0
  %244 = vmatprep.mubr.bf16.mxu0 0
  %245 = vmatmul.mubr.bf16.gmra.mrb[0].mxu0 %v150
  %v246 = vpop.f32.mrb[0].mxu0
  %v247 = vadd.f32 0.0, %v246
  %v248 = vpop.f32.mrb[0].mxu0
  %v249 = vpop.f32.mrb[0].mxu0
  %v250 = vadd.f32 0.0, %v249
  %v251 = vpop.f32.mrb[0].mxu0
  %252 = vdwg.mxu0
  %v253 = vadd.f32 %v35, %v191
  %v254 = vadd.f32 %v36, %v194
  %v255 = vadd.f32 %v37, %v199
  %v256 = vadd.f32 %v38, %v202
  %v257 = vadd.f32 %v39, %v207
  %v258 = vadd.f32 %v40, %v210
  %v259 = vadd.f32 %v41, %v215
  %v260 = vadd.f32 %v42, %v218
  %v261 = vadd.f32 %v43, %v223
  %v262 = vadd.f32 %v44, %v226
  %v263 = vadd.f32 %v45, %v231
  %v264 = vadd.f32 %v46, %v234
  %v265 = vadd.f32 %v47, %v239
  %v266 = vadd.f32 %v48, %v242
  %v267 = vadd.f32 %v49, %v247
  %v268 = vadd.f32 %v50, %v250
  %269 = vst [vmem:[#allocation2] sm:$0xff] %v253
  %270 = vst [vmem:[#allocation2 + $0x8] sm:$0xff] %v254
  %271 = vst [vmem:[#allocation2 + $0x10] sm:$0xff] %v255
  %272 = vst [vmem:[#allocation2 + $0x18] sm:$0xff] %v256
  %273 = vst [vmem:[#allocation2 + $0x20] sm:$0xff] %v257
  %274 = vst [vmem:[#allocation2 + $0x28] sm:$0xff] %v258
  %275 = vst [vmem:[#allocation2 + $0x30] sm:$0xff] %v259
  %276 = vst [vmem:[#allocation2 + $0x38] sm:$0xff] %v260
  %277 = vst [vmem:[#allocation2 + $0x40] sm:$0xff] %v261
  %278 = vst [vmem:[#allocation2 + $0x48] sm:$0xff] %v262
  %279 = vst [vmem:[#allocation2 + $0x50] sm:$0xff] %v263
  %280 = vst [vmem:[#allocation2 + $0x58] sm:$0xff] %v264
  %281 = vst [vmem:[#allocation2 + $0x60] sm:$0xff] %v265
  %282 = vst [vmem:[#allocation2 + $0x68] sm:$0xff] %v266
  %283 = vst [vmem:[#allocation2 + $0x70] sm:$0xff] %v267
  %284 = vst [vmem:[#allocation2 + $0x78] sm:$0xff] %v268
  // Predicated region
  $region18: #{conv_encoder_forward.4} parent=0 // pred_check
    %p285 = pneg %p15
  $region19: #{conv_encoder_forward.4} parent=0 // pred_check_branch
    %287 = sbr.rel (%p285) target = $region21
  $region20: #{conv_encoder_forward.4} parent=0 // pred_region
    %v288 = vld [vmem:[#allocation2] sm:$0xff]
    %v289 = vld [vmem:[#allocation2 + $0x8] sm:$0xff]
    %v290 = vld [vmem:[#allocation2 + $0x10] sm:$0xff]
    %v291 = vld [vmem:[#allocation2 + $0x18] sm:$0xff]
    %v292 = vld [vmem:[#allocation2 + $0x20] sm:$0xff]
    %v293 = vld [vmem:[#allocation2 + $0x28] sm:$0xff]
    %v294 = vld [vmem:[#allocation2 + $0x30] sm:$0xff]
    %v295 = vld [vmem:[#allocation2 + $0x38] sm:$0xff]
    %v296 = vld [vmem:[#allocation2 + $0x40] sm:$0xff]
    %v297 = vld [vmem:[#allocation2 + $0x48] sm:$0xff]
    %v298 = vld [vmem:[#allocation2 + $0x50] sm:$0xff]
    %v299 = vld [vmem:[#allocation2 + $0x58] sm:$0xff]
    %v300 = vld [vmem:[#allocation2 + $0x60] sm:$0xff]
    %v301 = vld [vmem:[#allocation2 + $0x68] sm:$0xff]
    %v302 = vld [vmem:[#allocation2 + $0x70] sm:$0xff]
    %v303 = vld [vmem:[#allocation2 + $0x78] sm:$0xff]
    %v304 = vld [vmem:[%s2] sm:$0x1]
    %v306 = vlaneseq
    %v307 = vshrl.u32 %v306, 7
    %v308 = vsub.s32 0, %v307
    %v309 = vrot.slane %v304, %v308
    %v311 = vadd.f32 %v288, %v309
    %v312 = vadd.f32 %v289, %v309
    %v313 = vadd.f32 %v290, %v309
    %v314 = vadd.f32 %v291, %v309
    %v315 = vadd.f32 %v292, %v309
    %v316 = vadd.f32 %v293, %v309
    %v317 = vadd.f32 %v294, %v309
    %v318 = vadd.f32 %v295, %v309
    %v319 = vadd.f32 %v296, %v309
    %v320 = vadd.f32 %v297, %v309
    %v321 = vadd.f32 %v298, %v309
    %v322 = vadd.f32 %v299, %v309
    %v323 = vadd.f32 %v300, %v309
    %v324 = vadd.f32 %v301, %v309
    %v325 = vadd.f32 %v302, %v309
    %v326 = vadd.f32 %v303, %v309
    %v327 = vmax.f32 %v311, 0.0
    %v328 = vmax.f32 %v312, 0.0
    %v329 = vmax.f32 %v313, 0.0
    %v330 = vmax.f32 %v314, 0.0
    %v331 = vmax.f32 %v315, 0.0
    %v332 = vmax.f32 %v316, 0.0
    %v333 = vmax.f32 %v317, 0.0
    %v334 = vmax.f32 %v318, 0.0
    %v335 = vmax.f32 %v319, 0.0
    %v336 = vmax.f32 %v320, 0.0
    %v337 = vmax.f32 %v321, 0.0
    %v338 = vmax.f32 %v322, 0.0
    %v339 = vmax.f32 %v323, 0.0
    %v340 = vmax.f32 %v324, 0.0
    %v341 = vmax.f32 %v325, 0.0
    %v342 = vmax.f32 %v326, 0.0
    %v343 = vpack.c.bf16 %v328, %v327
    %v344 = vpack.c.bf16 %v330, %v329
    %v345 = vpack.c.bf16 %v332, %v331
    %v346 = vpack.c.bf16 %v334, %v333
    %v347 = vpack.c.bf16 %v336, %v335
    %v348 = vpack.c.bf16 %v338, %v337
    %v349 = vpack.c.bf16 %v340, %v339
    %v350 = vpack.c.bf16 %v342, %v341
    %v359 = vunpack.c.l.b16 %v343
    %v360 = vunpack.c.h.b16 %v343
    %v361 = vunpack.c.l.b16 %v344
    %v362 = vunpack.c.h.b16 %v344
    %v363 = vunpack.c.l.b16 %v345
    %v364 = vunpack.c.h.b16 %v345
    %v365 = vunpack.c.l.b16 %v346
    %v366 = vunpack.c.h.b16 %v346
    %v367 = vunpack.c.l.b16 %v347
    %v368 = vunpack.c.h.b16 %v347
    %v369 = vunpack.c.l.b16 %v348
    %v370 = vunpack.c.h.b16 %v348
    %v371 = vunpack.c.l.b16 %v349
    %v372 = vunpack.c.h.b16 %v349
    %v373 = vunpack.c.l.b16 %v350
    %v374 = vunpack.c.h.b16 %v350
    %v375 = vpack.c.b16 %v359, %v359
    %v376 = vpack.c.b16 %v360, %v360
    %v377 = vpack.c.b16 %v361, %v361
    %v378 = vpack.c.b16 %v362, %v362
    %v379 = vpack.c.b16 %v363, %v363
    %v380 = vpack.c.b16 %v364, %v364
    %v381 = vpack.c.b16 %v365, %v365
    %v382 = vpack.c.b16 %v366, %v366
    %v383 = vpack.c.b16 %v367, %v367
    %v384 = vpack.c.b16 %v368, %v368
    %v385 = vpack.c.b16 %v369, %v369
    %v386 = vpack.c.b16 %v370, %v370
    %v387 = vpack.c.b16 %v371, %v371
    %v388 = vpack.c.b16 %v372, %v372
    %v389 = vpack.c.b16 %v373, %v373
    %v390 = vpack.c.b16 %v374, %v374
    %407 = vst [vmem:[%s3] sm:$0xf] %v375
    %408 = vst [vmem:[%s3 + $0x4] sm:$0xf] %v376
    %409 = vst [vmem:[%s3 + $0x8] sm:$0xf] %v377
    %410 = vst [vmem:[%s3 + $0xc] sm:$0xf] %v378
    %411 = vst [vmem:[%s3 + $0x10] sm:$0xf] %v379
    %412 = vst [vmem:[%s3 + $0x14] sm:$0xf] %v380
    %413 = vst [vmem:[%s3 + $0x18] sm:$0xf] %v381
    %414 = vst [vmem:[%s3 + $0x1c] sm:$0xf] %v382
    %415 = vst [vmem:[%s3 + $0x20] sm:$0xf] %v383
    %416 = vst [vmem:[%s3 + $0x24] sm:$0xf] %v384
    %417 = vst [vmem:[%s3 + $0x28] sm:$0xf] %v385
    %418 = vst [vmem:[%s3 + $0x2c] sm:$0xf] %v386
    %419 = vst [vmem:[%s3 + $0x30] sm:$0xf] %v387
    %420 = vst [vmem:[%s3 + $0x34] sm:$0xf] %v388
    %421 = vst [vmem:[%s3 + $0x38] sm:$0xf] %v389
    %422 = vst [vmem:[%s3 + $0x3c] sm:$0xf] %v390
  $region21: #{conv_encoder_forward.4} parent=0 // pred_fallthru
    _
  // Predicated region
  $region22: #{conv_encoder_forward.4} parent=0 // pred_check
    _
  $region23: #{conv_encoder_forward.4} parent=0 // pred_check_branch
    %424 = sbr.rel (0) target = $region25
  $region24: #{conv_encoder_forward.4} parent=0 // pred_region
    _
  $region25: #{conv_encoder_forward.4} parent=0 // pred_fallthru
    _
  // Predicated region
  $region26: #{conv_encoder_forward.4} parent=0 // pred_check
    _
  $region27: #{conv_encoder_forward.4} parent=0 // pred_check_branch
    %426 = sbr.rel (0) target = $region29
  $region28: #{conv_encoder_forward.4} parent=0 // pred_region
    _
  $region29: #{conv_encoder_forward.4} parent=0 // pred_fallthru
    _

// kernel: conv_encoder_forward.5
$region0: #{conv_encoder_forward.5}
  #allocation0 [shape = 'u32[]', space=smem, size = 0x4, offset = 0x4, fixed_abs, tag = 'smem constant byte address 0x4 - core index']
  #allocation1 [shape = 'u32[144,128]{1,0:T(1,128)}', space=vmem, size = 0x12000, scoped, tag = 'internal scratch']
  #allocation2 [shape = 'f32[32,128]{1,0:T(8,128)}', space=vmem, size = 0x4000, scoped, tag = 'scratch operand']
  %s0 = inlined_call_operand.vmem [shape: bf16[32,1152], index: 0, kind: input, shape index: {}]
  %s1 = inlined_call_operand.vmem [shape: bf16[1152,128], index: 1, kind: input, shape index: {}]
  %s2 = inlined_call_operand.vmem [shape: f32[1,128], index: 2, kind: input, shape index: {}]
  %s3 = inlined_call_operand.vmem [shape: bf16[32,128], index: 3, kind: output, shape index: {}]
  %s4 = sld [smem:[#allocation0]]
  $region94: #{conv_encoder_forward.5} parent=0
    _
  %s6 = ssub.s32 1, %s4
  %s7 = scalar_select 0, %s6, %s4
  $region1: #{conv_encoder_forward.5} parent=0
    #allocation3 [shape = 'u8[16384]{0}', space=vmem, size = 0x4000, scoped, tag = 'input window, operand 0']
    loop: start=0, step=1, limit=11
    $region2: #{conv_encoder_forward.5} parent=1 // loop_pre_header
      _
    $region3: #{conv_encoder_forward.5} parent=1 // loop_header
      %s9 = sphi 0, %s13
      %p10 = scmp.ge.s32.totalorder %s9, 11
      %s16 = sphi 0, %s35
      %s17 = sphi 0, %s31
      %s18 = sphi 0, %s27
      %s19 = sphi 0, %s16
      %s20 = sphi 0, %s17
      %s21 = sphi 0, %s18
      %s22 = sphi 0, %s19
      %s23 = sphi 0, %s20
      %s24 = sphi 0, %s21
      %s40 = sphi 0, %s42
      %s43 = sphi 0, %s40
      %s44 = sphi 0, %s43
      %s60 = sphi 0, %s44
      %s68 = sphi 0, %s70
      %s71 = sphi 0, %s68
      %s72 = sphi 0, %s71
      %s88 = sphi 0, %s72
      %s94 = sphi 0, %s96
      %s97 = sphi 0, %s94
      %s98 = sphi 0, %s97
      %s114 = sphi 0, %s98
      %s122 = sphi 0, %s124
      %s125 = sphi 0, %s122
      %s126 = sphi 0, %s125
      %s142 = sphi 0, %s126
    $region4: #{conv_encoder_forward.5} parent=1 // loop_header_branch
      %12 = sbr.rel (%p10) target = $region8
    $region5: #{conv_encoder_forward.5} parent=1 // loop_body
      %s14 = ssub.s32 %s9, 1
      %s15 = ssub.s32 %s9, 2
      %s25 = sadd.s32 1, %s18
      %p26 = scmp.ge.s32.totalorder %s25, 9
      %s27 = scalar_select %p26, 0, %s25
      %s28 = sadd.s32 1, %s17
      %s29 = scalar_select %p26, %s28, %s17
      %p30 = scmp.ge.s32.totalorder %s29, 1
      %s31 = scalar_select %p30, 0, %s29
      %s32 = sadd.s32 1, %s16
      %s33 = scalar_select %p30, %s32, %s16
      %p34 = scmp.ge.s32.totalorder %s33, 1
      %s35 = scalar_select %p34, 0, %s33
      %s36 = ssub.s32 %s16, %s35
      %s37 = ssub.s32 %s18, %s27
      %s38 = sor.u32 %s36, %s37
      %p39 = scmp.eq.s32.totalorder %s38, 0
      %s41 = sadd.s32 %s40, 1
      %s42 = scalar_select %p39, %s40, %s41
      %p45 = pneg %p39
      %p46 = scmp.eq.s32.totalorder %s9, 8
      %p47 = por %p45, %p46
      %p48 = scmp.ne.s32.totalorder %s40, %s43
      %p49 = scmp.eq.s32.totalorder %s9, 0
      %p50 = por %p48, %p49
      %p51 = scmp.ne.s32.totalorder %s40, %s43
      %p52 = scmp.eq.s32.totalorder %s14, 8
      %p53 = por %p51, %p52
      %p54 = scmp.ne.s32.totalorder %s43, %s44
      %p55 = scmp.eq.s32.totalorder %s14, 0
      %p56 = por %p54, %p55
      %p57 = scmp.ne.s32.totalorder %s43, %s44
      %p58 = scmp.eq.s32.totalorder %s15, 8
      %p59 = por %p57, %p58
      %p61 = scmp.ne.s32.totalorder %s44, %s60
      %p62 = scmp.eq.s32.totalorder %s15, 0
      %p63 = por %p61, %p62
      %s64 = ssub.s32 %s18, %s27
      %s65 = ssub.s32 %s17, %s31
      %s66 = sor.u32 %s64, %s65
      %p67 = scmp.eq.s32.totalorder %s66, 0
      %s69 = sadd.s32 %s68, 1
      %s70 = scalar_select %p67, %s68, %s69
      %p73 = pneg %p67
      %p74 = scmp.eq.s32.totalorder %s9, 8
      %p75 = por %p73, %p74
      %p76 = scmp.ne.s32.totalorder %s68, %s71
      %p77 = scmp.eq.s32.totalorder %s9, 0
      %p78 = por %p76, %p77
      %p79 = scmp.ne.s32.totalorder %s68, %s71
      %p80 = scmp.eq.s32.totalorder %s14, 8
      %p81 = por %p79, %p80
      %p82 = scmp.ne.s32.totalorder %s71, %s72
      %p83 = scmp.eq.s32.totalorder %s14, 0
      %p84 = por %p82, %p83
      %p85 = scmp.ne.s32.totalorder %s71, %s72
      %p86 = scmp.eq.s32.totalorder %s15, 8
      %p87 = por %p85, %p86
      %p89 = scmp.ne.s32.totalorder %s72, %s88
      %p90 = scmp.eq.s32.totalorder %s15, 0
      %p91 = por %p89, %p90
      %s92 = ssub.s32 %s17, %s31
      %p93 = scmp.eq.s32.totalorder %s92, 0
      %s95 = sadd.s32 %s94, 1
      %s96 = scalar_select %p93, %s94, %s95
      %p99 = pneg %p93
      %p100 = scmp.eq.s32.totalorder %s9, 8
      %p101 = por %p99, %p100
      %p102 = scmp.ne.s32.totalorder %s94, %s97
      %p103 = scmp.eq.s32.totalorder %s9, 0
      %p104 = por %p102, %p103
      %p105 = scmp.ne.s32.totalorder %s94, %s97
      %p106 = scmp.eq.s32.totalorder %s14, 8
      %p107 = por %p105, %p106
      %p108 = scmp.ne.s32.totalorder %s97, %s98
      %p109 = scmp.eq.s32.totalorder %s14, 0
      %p110 = por %p108, %p109
      %p111 = scmp.ne.s32.totalorder %s97, %s98
      %p112 = scmp.eq.s32.totalorder %s15, 8
      %p113 = por %p111, %p112
      %p115 = scmp.ne.s32.totalorder %s98, %s114
      %p116 = scmp.eq.s32.totalorder %s15, 0
      %p117 = por %p115, %p116
      %s118 = ssub.s32 %s16, %s35
      %s119 = ssub.s32 %s17, %s31
      %s120 = sor.u32 %s118, %s119
      %p121 = scmp.eq.s32.totalorder %s120, 0
      %s123 = sadd.s32 %s122, 1
      %s124 = scalar_select %p121, %s122, %s123
      %p127 = pneg %p121
      %p128 = scmp.eq.s32.totalorder %s9, 8
      %p129 = por %p127, %p128
      %p130 = scmp.ne.s32.totalorder %s122, %s125
      %p131 = scmp.eq.s32.totalorder %s9, 0
      %p132 = por %p130, %p131
      %p133 = scmp.ne.s32.totalorder %s122, %s125
      %p134 = scmp.eq.s32.totalorder %s14, 8
      %p135 = por %p133, %p134
      %p136 = scmp.ne.s32.totalorder %s125, %s126
      %p137 = scmp.eq.s32.totalorder %s14, 0
      %p138 = por %p136, %p137
      %p139 = scmp.ne.s32.totalorder %s125, %s126
      %p140 = scmp.eq.s32.totalorder %s15, 8
      %p141 = por %p139, %p140
      %p143 = scmp.ne.s32.totalorder %s126, %s142
      %p144 = scmp.eq.s32.totalorder %s15, 0
      %p145 = por %p143, %p144
      %p146 = scmp.le.s32.totalorder 1, %s9
      %p147 = scmp.lt.s32.totalorder %s9, 10
      %p148 = pnand %p146, %p147
      %p149 = pneg %p148
      // Predicated region
      $region9: #{conv_encoder_forward.5} parent=5 // pred_check
        _
      $region10: #{conv_encoder_forward.5} parent=5 // pred_check_branch
        %151 = sbr.rel (%p148) target = $region12
      $region11: #{conv_encoder_forward.5} parent=5 // pred_region
        %s152 = ssub.s32 %s9, 1
        // Predicated region
        $region13: #{conv_encoder_forward.5} parent=11 // pred_check
          %p153 = pneg %p110
        $region14: #{conv_encoder_forward.5} parent=11 // pred_check_branch
          %155 = sbr.rel (%p153) target = $region16
        $region15: #{conv_encoder_forward.5} parent=11 // pred_region
          %p156 = scmp.lt.s32.totalorder %s20, 0
          %s157 = scalar_select %p156, %s20, 0
          %s158 = scalar_lea.vmem %s2, %s157
        $region16: #{conv_encoder_forward.5} parent=11 // pred_fallthru
          _
      $region12: #{conv_encoder_forward.5} parent=5 // pred_fallthru
        _
      %p159 = scmp.lt.s32.totalorder %s9, 9
      // Predicated region
      $region17: #{conv_encoder_forward.5} parent=5 // pred_check
        %p160 = pneg %p159
      $region18: #{conv_encoder_forward.5} parent=5 // pred_check_branch
        %162 = sbr.rel (%p160) target = $region20
      $region19: #{conv_encoder_forward.5} parent=5 // pred_region
        // Predicated region
        $region21: #{conv_encoder_forward.5} parent=19 // pred_check
          %p163 = pneg %p50
        $region22: #{conv_encoder_forward.5} parent=19 // pred_check_branch
          %165 = sbr.rel (%p163) target = $region24
        $region23: #{conv_encoder_forward.5} parent=19 // pred_region
          %s166 = sand.u32 %s40, 1
          %s167 = sand.u32 %s40, 1
          %s168 = smul.addr %s167, 16
          %s169 = scalar_lea.vmem [#allocation3], %s168
          %s170 = smul.u32 4, %s16
          %s171 = smul.addr %s170, 9
          %s172 = sadd.s32 %s18, %s171
          %s173 = smul.addr %s172, 4
          %s174 = scalar_lea.vmem %s0, %s173
          // Predicated region
          $region25: #{conv_encoder_forward.5} parent=23 // pred_check
            _
          $region26: #{conv_encoder_forward.5} parent=23 // pred_check_branch
            %176 = sbr.rel (0) target = $region28
          $region27: #{conv_encoder_forward.5} parent=23 // pred_region
            // Predicated region
            $region29: #{conv_encoder_forward.5} parent=27 // pred_check
              _
            $region30: #{conv_encoder_forward.5} parent=27 // pred_check_branch
              %178 = sbr.rel target = $region32
            $region31: #{conv_encoder_forward.5} parent=27 // pred_region
              // Predicated region
              $region44: #{conv_encoder_forward.5} parent=31 // pred_check
                _
              $region45: #{conv_encoder_forward.5} parent=31 // pred_check_branch
                %199 = sbr.rel (0) target = $region47
              $region46: #{conv_encoder_forward.5} parent=31 // pred_region
                loop: start=0, step=1, limit=1
                $region48: #{conv_encoder_forward.5} parent=46 // loop_pre_header
                  _
                $region49: #{conv_encoder_forward.5} parent=46 // loop_header
                  %s201 = sphi 0, %s205
                  %p202 = scmp.ge.s32.totalorder %s201, 1
                  %s206 = sphi %s174, %s174
                  %s207 = sphi %s169, %s169
                $region50: #{conv_encoder_forward.5} parent=46 // loop_header_branch
                  %204 = sbr.rel (%p202) target = $region54
                $region51: #{conv_encoder_forward.5} parent=46 // loop_body
                  _
                $region52: #{conv_encoder_forward.5} parent=46 // loop_footer
                  %s205 = sadd.s32 1, %s201
                $region53: #{conv_encoder_forward.5} parent=46 // loop_footer_branch
                  %200 = sbr.rel target = $region49
                $region54: #{conv_encoder_forward.5} parent=46 // loop_exit
                  _
                loop: start=0, step=1, limit=1
                $region55: #{conv_encoder_forward.5} parent=46 // loop_pre_header
                  _
                $region56: #{conv_encoder_forward.5} parent=46 // loop_header
                  %s210 = sphi 0, %s214
                  %p211 = scmp.ge.s32.totalorder %s210, 1
                  %s215 = sphi %s174, %s174
                  %s216 = sphi %s169, %s169
                $region57: #{conv_encoder_forward.5} parent=46 // loop_header_branch
                  %213 = sbr.rel (%p211) target = $region61
                $region58: #{conv_encoder_forward.5} parent=46 // loop_body
                  %v217 = vld [vmem:[%s215] sm:$0xf]
                  %218 = vst [vmem:[%s216] sm:$0xf] %v217
                  %v219 = vld [vmem:[%s215 + $0x24] sm:$0xf]
                  %220 = vst [vmem:[%s216 + $0x4] sm:$0xf] %v219
                  %v221 = vld [vmem:[%s215 + $0x48] sm:$0xf]
                  %222 = vst [vmem:[%s216 + $0x8] sm:$0xf] %v221
                  %v223 = vld [vmem:[%s215 + $0x6c] sm:$0xf]
                  %224 = vst [vmem:[%s216 + $0xc] sm:$0xf] %v223
                $region59: #{conv_encoder_forward.5} parent=46 // loop_footer
                  %s214 = sadd.s32 1, %s210
                $region60: #{conv_encoder_forward.5} parent=46 // loop_footer_branch
                  %209 = sbr.rel target = $region56
                $region61: #{conv_encoder_forward.5} parent=46 // loop_exit
                  _
              $region47: #{conv_encoder_forward.5} parent=31 // pred_fallthru
                _
            $region32: #{conv_encoder_forward.5} parent=27 // pred_fallthru
              _
            // Predicated region
            $region33: #{conv_encoder_forward.5} parent=27 // pred_check
              _
            $region34: #{conv_encoder_forward.5} parent=27 // pred_check_branch
              %180 = sbr.rel (0) target = $region36
            $region35: #{conv_encoder_forward.5} parent=27 // pred_region
              loop: start=0, step=1, limit=1
              $region37: #{conv_encoder_forward.5} parent=35 // loop_pre_header
                _
              $region38: #{conv_encoder_forward.5} parent=35 // loop_header
                %s183 = sphi 0, %s187
                %p184 = scmp.ge.s32.totalorder %s183, 1
                %s188 = sphi %s174, %s174
                %s189 = sphi %s169, %s169
              $region39: #{conv_encoder_forward.5} parent=35 // loop_header_branch
                %186 = sbr.rel (%p184) target = $region43
              $region40: #{conv_encoder_forward.5} parent=35 // loop_body
                %v190 = vld [vmem:[%s188] sm:$0xf]
                %191 = vst [vmem:[%s189] sm:$0xf] %v190
                %v192 = vld [vmem:[%s188 + $0x24] sm:$0xf]
                %193 = vst [vmem:[%s189 + $0x4] sm:$0xf] %v192
                %v194 = vld [vmem:[%s188 + $0x48] sm:$0xf]
                %195 = vst [vmem:[%s189 + $0x8] sm:$0xf] %v194
                %v196 = vld [vmem:[%s188 + $0x6c] sm:$0xf]
                %197 = vst [vmem:[%s189 + $0xc] sm:$0xf] %v196
              $region41: #{conv_encoder_forward.5} parent=35 // loop_footer
                %s187 = sadd.s32 1, %s183
              $region42: #{conv_encoder_forward.5} parent=35 // loop_footer_branch
                %182 = sbr.rel target = $region38
              $region43: #{conv_encoder_forward.5} parent=35 // loop_exit
                _
            $region36: #{conv_encoder_forward.5} parent=27 // pred_fallthru
              _
          $region28: #{conv_encoder_forward.5} parent=23 // pred_fallthru
            _
          %225 = vnop
        $region24: #{conv_encoder_forward.5} parent=19 // pred_fallthru
          _
        // Predicated region
        $region62: #{conv_encoder_forward.5} parent=19 // pred_check
          %p226 = pneg %p78
        $region63: #{conv_encoder_forward.5} parent=19 // pred_check_branch
          %228 = sbr.rel (%p226) target = $region65
        $region64: #{conv_encoder_forward.5} parent=19 // pred_region
          %s229 = smul.u32 16, %s18
          %p230 = scmp.lt.s32.totalorder %s229, 143
          %s231 = scalar_select %p230, %s229, 143
          %p232 = scmp.lt.s32.totalorder %s17, 0
          %s233 = scalar_select %p232, %s17, 0
          %s234 = sadd.s32 %s233, %s231
          %s235 = smul.addr %s234, 4
          %s236 = scalar_lea.vmem %s1, %s235
          %s237 = smul.u32 16, %s18
        $region65: #{conv_encoder_forward.5} parent=19 // pred_fallthru
          _
      $region20: #{conv_encoder_forward.5} parent=5 // pred_fallthru
        _
      %p238 = scmp.le.s32.totalorder 1, %s9
      %p239 = scmp.lt.s32.totalorder %s9, 10
      %p240 = pnand %p238, %p239
      %p241 = pneg %p240
      // Predicated region
      $region66: #{conv_encoder_forward.5} parent=5 // pred_check
        _
      $region67: #{conv_encoder_forward.5} parent=5 // pred_check_branch
        %243 = sbr.rel (%p240) target = $region69
      $region68: #{conv_encoder_forward.5} parent=5 // pred_region
        %s244 = ssub.s32 %s9, 1
        %s245 = sand.u32 %s43, 1
        %s246 = sand.u32 %s43, 1
        %s247 = smul.addr %s246, 16
        %s248 = scalar_lea.vmem [#allocation3], %s247
        // Predicated region
        $region70: #{conv_encoder_forward.5} parent=68 // pred_check
          %p249 = pneg %p56
        $region71: #{conv_encoder_forward.5} parent=68 // pred_check_branch
          %251 = sbr.rel (%p249) target = $region73
        $region72: #{conv_encoder_forward.5} parent=68 // pred_region
          _
        $region73: #{conv_encoder_forward.5} parent=68 // pred_fallthru
          _
        %s252 = sand.u32 %s43, 1
        %s253 = sand.u32 %s43, 1
        %s254 = smul.addr %s253, 16
        %s255 = scalar_lea.vmem [#allocation3], %s254
        %p256 = pneg %p56
        %p257 = pneg %p53
        %s258 = smul.u32 16, %s21
        %p259 = scmp.lt.s32.totalorder %s258, 143
        %s260 = scalar_select %p259, %s258, 143
        %p261 = scmp.lt.s32.totalorder %s20, 0
        %s262 = scalar_select %p261, %s20, 0
        %s263 = sadd.s32 %s262, %s260
        %s264 = smul.addr %s263, 4
        %s265 = scalar_lea.vmem %s1, %s264
        %p266 = pneg %p84
        %p267 = pneg %p81
        %p268 = scmp.lt.s32.totalorder %s20, 0
        %s269 = scalar_select %p268, %s20, 0
        %s270 = scalar_lea.vmem %s2, %s269
        %p271 = pneg %p110
        %p272 = pneg %p107
        %p273 = pneg %p138
        %p274 = pneg %p135
        %s275 = smul.u32 4, %s19
        %p276 = scmp.lt.s32.totalorder %s275, 3
        %s277 = scalar_select %p276, %s275, 3
        %p278 = scmp.lt.s32.totalorder %s20, 0
        %s279 = scalar_select %p278, %s20, 0
        %s280 = sadd.s32 %s279, %s277
        %s281 = smul.addr %s280, 4
        %s282 = scalar_lea.vmem %s3, %s281
        %s283 = smul.u32 4, %s19
        %s284 = smul.u32 16, %s21
        %p285 = scmp.lt.s32.totalorder %s284, 143
        %s286 = scalar_select %p285, %s284, 143
        %p287 = scmp.lt.s32.totalorder %s20, 0
        %s288 = scalar_select %p287, %s20, 0
        %s289 = sadd.s32 %s288, %s286
        %s290 = smul.addr %s289, 4
        %s291 = scalar_lea.vmem %s1, %s290
        %s292 = smul.u32 16, %s21
        %p293 = scmp.lt.s32.totalorder %s20, 0
        %s294 = scalar_select %p293, %s20, 0
        %s295 = scalar_lea.vmem %s2, %s294
        %s296 = smul.u32 4, %s19
        %p297 = scmp.lt.s32.totalorder %s296, 3
        %s298 = scalar_select %p297, %s296, 3
        %p299 = scmp.lt.s32.totalorder %s20, 0
        %s300 = scalar_select %p299, %s20, 0
        %s301 = sadd.s32 %s300, %s298
        %s302 = smul.addr %s301, 4
        %s303 = scalar_lea.vmem %s3, %s302
        %s304 = smul.u32 4, %s19
        %p306 = scmp.eq.s32.totalorder %s21, 0
        // Predicated region
        $region74: #{conv_encoder_forward.5} parent=68 // pred_check
          %p307 = pneg %p306
        $region75: #{conv_encoder_forward.5} parent=68 // pred_check_branch
          %309 = sbr.rel (%p307) target = $region77
        $region76: #{conv_encoder_forward.5} parent=68 // pred_region
          %310 = vst [vmem:[#allocation2] sm:$0xff] 0.0
          %311 = vst [vmem:[#allocation2 + $0x8] sm:$0xff] 0.0
          %312 = vst [vmem:[#allocation2 + $0x10] sm:$0xff] 0.0
          %313 = vst [vmem:[#allocation2 + $0x18] sm:$0xff] 0.0
        $region77: #{conv_encoder_forward.5} parent=68 // pred_fallthru
          _
        %v314 = vld [vmem:[#allocation2] sm:$0xff]
        %v315 = vld [vmem:[#allocation2 + $0x8] sm:$0xff]
        %v316 = vld [vmem:[#allocation2 + $0x10] sm:$0xff]
        %v317 = vld [vmem:[#allocation2 + $0x18] sm:$0xff]
        %v318 = vld [vmem:[%s248] sm:$0xf]
        %v319 = vld [vmem:[%s248 + $0x4] sm:$0xf]
        %v320 = vld [vmem:[%s248 + $0x8] sm:$0xf]
        %v321 = vld [vmem:[%s248 + $0xc] sm:$0xf]
        %v322 = vld [vmem:[%s291] sm:$0xf]
        %v323 = vld [vmem:[%s291 + $0x4] sm:$0xf]
        %v324 = vld [vmem:[%s291 + $0x8] sm:$0xf]
        %v325 = vld [vmem:[%s291 + $0xc] sm:$0xf]
        %v326 = vld [vmem:[%s291 + $0x10] sm:$0xf]
        %v327 = vld [vmem:[%s291 + $0x14] sm:$0xf]
        %v328 = vld [vmem:[%s291 + $0x18] sm:$0xf]
        %v329 = vld [vmem:[%s291 + $0x1c] sm:$0xf]
        %v330 = vld [vmem:[%s291 + $0x20] sm:$0xf]
        %v331 = vld [vmem:[%s291 + $0x24] sm:$0xf]
        %v332 = vld [vmem:[%s291 + $0x28] sm:$0xf]
        %v333 = vld [vmem:[%s291 + $0x2c] sm:$0xf]
        %v334 = vld [vmem:[%s291 + $0x30] sm:$0xf]
        %v335 = vld [vmem:[%s291 + $0x34] sm:$0xf]
        %v336 = vld [vmem:[%s291 + $0x38] sm:$0xf]
        %v337 = vld [vmem:[%s291 + $0x3c] sm:$0xf]
        %v342 = vunpack.c.l.b16 %v318
        %v343 = vunpack.c.l.b16 %v319
        %v344 = vunpack.c.l.b16 %v320
        %v345 = vunpack.c.l.b16 %v321
        %v346 = vpack.c.b16 %v343, %v342
        %v347 = vpack.c.b16 %v345, %v344
        %v366 = vunpack.c.l.b16 %v322
        %v367 = vunpack.c.l.b16 %v323
        %v368 = vunpack.c.l.b16 %v324
        %v369 = vunpack.c.l.b16 %v325
        %v370 = vunpack.c.l.b16 %v326
        %v371 = vunpack.c.l.b16 %v327
        %v372 = vunpack.c.l.b16 %v328
        %v373 = vunpack.c.l.b16 %v329
        %v374 = vunpack.c.l.b16 %v330
        %v375 = vunpack.c.l.b16 %v331
        %v376 = vunpack.c.l.b16 %v332
        %v377 = vunpack.c.l.b16 %v333
        %v378 = vunpack.c.l.b16 %v334
        %v379 = vunpack.c.l.b16 %v335
        %v380 = vunpack.c.l.b16 %v336
        %v381 = vunpack.c.l.b16 %v337
        %v382 = vpack.c.b16 %v367, %v366
        %v383 = vpack.c.b16 %v369, %v368
        %v384 = vpack.c.b16 %v371, %v370
        %v385 = vpack.c.b16 %v373, %v372
        %v386 = vpack.c.b16 %v375, %v374
        %v387 = vpack.c.b16 %v377, %v376
        %v388 = vpack.c.b16 %v379, %v378
        %v389 = vpack.c.b16 %v381, %v380
        %398 = vmatprep.subr.bf16.mxu0 0
        %399 = vmatpush1.bf16.msra.mxu0 %v382
        %400 = vmatprep.subr.bf16.mxu0 0
        %401 = vmatpush1.bf16.msra.mxu0 %v383
        %402 = vmatprep.subr.bf16.mxu0 0
        %403 = vmatpush1.bf16.msra.mxu0 %v384
        %404 = vmatprep.subr.bf16.mxu0 0
        %405 = vmatpush1.bf16.msra.mxu0 %v385
        %406 = vmatprep.subr.bf16.mxu0 0
        %407 = vmatpush1.bf16.msra.mxu0 %v386
        %408 = vmatprep.subr.bf16.mxu0 0
        %409 = vmatpush1.bf16.msra.mxu0 %v387
        %410 = vmatprep.subr.bf16.mxu0 0
        %411 = vmatpush1.bf16.msra.mxu0 %v388
        %412 = vmatprep.subr.bf16.mxu0 0
        %413 = vmatpush1.bf16.msra.mxu0 %v389
        %414 = vmatprep.subr.bf16.mxu0 0
        %415 = vmatpush1.bf16.msra.mxu0 0
        %416 = vmatprep.subr.bf16.mxu0 0
        %417 = vmatpush1.bf16.msra.mxu0 0
        %418 = vmatprep.subr.bf16.mxu0 0
        %419 = vmatpush1.bf16.msra.mxu0 0
        %420 = vmatprep.subr.bf16.mxu0 0
        %421 = vmatpush1.bf16.msra.mxu0 0
        %422 = vmatprep.subr.bf16.mxu0 0
        %423 = vmatpush1.bf16.msra.mxu0 0
        %424 = vmatprep.subr.bf16.mxu0 0
        %425 = vmatpush1.bf16.msra.mxu0 0
        %426 = vmatprep.subr.bf16.mxu0 0
        %427 = vmatpush1.bf16.msra.mxu0 0
        %428 = vmatprep.subr.bf16.mxu0 0
        %429 = vmatpush1.bf16.msra.mxu0 0
        %430 = vmatprep.mubr.bf16.mxu0 0
        %431 = vmatmul.mubr.bf16.gmra.mrb[0].mxu0 %v346
        %v432 = vpop.f32.mrb[0].mxu0
        %v433 = vadd.f32 0.0, %v432
        %v434 = vpop.f32.mrb[0].mxu0
        %v435 = vpop.f32.mrb[0].mxu0
        %v436 = vadd.f32 0.0, %v435
        %v437 = vpop.f32.mrb[0].mxu0
        %438 = vmatprep.mubr.bf16.mxu0 0
        %439 = vmatmul.mubr.bf16.gmra.mrb[0].mxu0 %v347
        %v440 = vpop.f32.mrb[0].mxu0
        %v441 = vadd.f32 0.0, %v440
        %v442 = vpop.f32.mrb[0].mxu0
        %v443 = vpop.f32.mrb[0].mxu0
        %v444 = vadd.f32 0.0, %v443
        %v445 = vpop.f32.mrb[0].mxu0
        %446 = vdwg.mxu0
        %v447 = vadd.f32 %v314, %v433
        %v448 = vadd.f32 %v315, %v436
        %v449 = vadd.f32 %v316, %v441
        %v450 = vadd.f32 %v317, %v444
        %451 = vst [vmem:[#allocation2] sm:$0xff] %v447
        %452 = vst [vmem:[#allocation2 + $0x8] sm:$0xff] %v448
        %453 = vst [vmem:[#allocation2 + $0x10] sm:$0xff] %v449
        %454 = vst [vmem:[#allocation2 + $0x18] sm:$0xff] %v450
        %p455 = scmp.eq.s32.totalorder %s21, 8
        // Predicated region
        $region78: #{conv_encoder_forward.5} parent=68 // pred_check
          %p456 = pneg %p455
        $region79: #{conv_encoder_forward.5} parent=68 // pred_check_branch
          %458 = sbr.rel (%p456) target = $region81
        $region80: #{conv_encoder_forward.5} parent=68 // pred_region
          %v459 = vld [vmem:[#allocation2] sm:$0xff]
          %v460 = vld [vmem:[#allocation2 + $0x8] sm:$0xff]
          %v461 = vld [vmem:[#allocation2 + $0x10] sm:$0xff]
          %v462 = vld [vmem:[#allocation2 + $0x18] sm:$0xff]
          %v463 = vld [vmem:[%s295] sm:$0x1]
          %v465 = vlaneseq
          %v466 = vshrl.u32 %v465, 7
          %v467 = vsub.s32 0, %v466
          %v468 = vrot.slane %v463, %v467
          %v470 = vadd.f32 %v459, %v468
          %v471 = vadd.f32 %v460, %v468
          %v472 = vadd.f32 %v461, %v468
          %v473 = vadd.f32 %v462, %v468
          %v474 = vmax.f32 %v470, 0.0
          %v475 = vmax.f32 %v471, 0.0
          %v476 = vmax.f32 %v472, 0.0
          %v477 = vmax.f32 %v473, 0.0
          %v478 = vpack.c.bf16 %v475, %v474
          %v479 = vpack.c.bf16 %v477, %v476
          %v482 = vunpack.c.l.b16 %v478
          %v483 = vunpack.c.h.b16 %v478
          %v484 = vunpack.c.l.b16 %v479
          %v485 = vunpack.c.h.b16 %v479
          %v486 = vpack.c.b16 %v482, %v482
          %v487 = vpack.c.b16 %v483, %v483
          %v488 = vpack.c.b16 %v484, %v484
          %v489 = vpack.c.b16 %v485, %v485
          %494 = vst [vmem:[%s303] sm:$0xf] %v486
          %495 = vst [vmem:[%s303 + $0x4] sm:$0xf] %v487
          %496 = vst [vmem:[%s303 + $0x8] sm:$0xf] %v488
          %497 = vst [vmem:[%s303 + $0xc] sm:$0xf] %v489
        $region81: #{conv_encoder_forward.5} parent=68 // pred_fallthru
          _
        %s498 = smul.u32 4, %s19
        %p499 = scmp.lt.s32.totalorder %s498, 3
        %s500 = scalar_select %p499, %s498, 3
        %p501 = scmp.lt.s32.totalorder %s20, 0
        %s502 = scalar_select %p501, %s20, 0
        %s503 = sadd.s32 %s502, %s500
        %s504 = smul.addr %s503, 4
        %s505 = scalar_lea.vmem %s3, %s504
        // Predicated region
        $region82: #{conv_encoder_forward.5} parent=68 // pred_check
          %p506 = pneg %p135
        $region83: #{conv_encoder_forward.5} parent=68 // pred_check_branch
          %508 = sbr.rel (%p506) target = $region85
        $region84: #{conv_encoder_forward.5} parent=68 // pred_region
          %s509 = smul.u32 4, %s19
        $region85: #{conv_encoder_forward.5} parent=68 // pred_fallthru
          _
        // Predicated region
        $region86: #{conv_encoder_forward.5} parent=68 // pred_check
          %p510 = pneg %p135
        $region87: #{conv_encoder_forward.5} parent=68 // pred_check_branch
          %512 = sbr.rel (%p510) target = $region89
        $region88: #{conv_encoder_forward.5} parent=68 // pred_region
          %s513 = smul.u32 4, %s19
          %p514 = scmp.lt.s32.totalorder %s513, 3
          %s515 = scalar_select %p514, %s513, 3
          %p516 = scmp.lt.s32.totalorder %s20, 0
          %s517 = scalar_select %p516, %s20, 0
          %s518 = sadd.s32 %s517, %s515
          %s519 = smul.addr %s518, 4
          %s520 = scalar_lea.vmem %s3, %s519
        $region89: #{conv_encoder_forward.5} parent=68 // pred_fallthru
          _
      $region69: #{conv_encoder_forward.5} parent=5 // pred_fallthru
        _
      %p521 = scmp.le.s32.totalorder 2, %s9
      // Predicated region
      $region90: #{conv_encoder_forward.5} parent=5 // pred_check
        %p522 = pneg %p521
      $region91: #{conv_encoder_forward.5} parent=5 // pred_check_branch
        %524 = sbr.rel (%p522) target = $region93
      $region92: #{conv_encoder_forward.5} parent=5 // pred_region
        %s525 = ssub.s32 %s9, 2
      $region93: #{conv_encoder_forward.5} parent=5 // pred_fallthru
        _
    $region6: #{conv_encoder_forward.5} parent=1 // loop_footer
      %s13 = sadd.s32 1, %s9
    $region7: #{conv_encoder_forward.5} parent=1 // loop_footer_branch
      %8 = sbr.rel target = $region3
    $region8: #{conv_encoder_forward.5} parent=1 // loop_exit
      _

// kernel: conv_encoder_forward.6
$region0: #{conv_encoder_forward.6}
  #allocation0 [shape = 'u32[]', space=smem, size = 0x4, offset = 0x4, fixed_abs, tag = 'smem constant byte address 0x4 - core index']
  #allocation1 [shape = 'u32[144,128]{1,0:T(1,128)}', space=vmem, size = 0x12000, scoped, tag = 'internal scratch']
  #allocation2 [shape = 'f32[2,128]{1,0:T(2,128)}', space=vmem, size = 0x400, scoped, tag = 'scratch operand']
  %s0 = inlined_call_operand.vmem [shape: bf16[2,2048], index: 0, kind: input, shape index: {}]
  %s1 = inlined_call_operand.vmem [shape: bf16[2048,128], index: 1, kind: input, shape index: {}]
  %s2 = inlined_call_operand.vmem [shape: f32[1,128], index: 2, kind: input, shape index: {}]
  %s3 = inlined_call_operand.vmem [shape: bf16[2,128], index: 3, kind: output, shape index: {}]
  %s4 = sld [smem:[#allocation0]]
  $region53: #{conv_encoder_forward.6} parent=0
    _
  %s6 = ssub.s32 1, %s4
  %s7 = scalar_select 0, %s6, %s4
  loop: start=0, step=1, limit=6
  $region2: #{conv_encoder_forward.6} parent=0 // loop_pre_header
    _
  $region3: #{conv_encoder_forward.6} parent=0 // loop_header
    %s9 = sphi 0, %s13
    %p10 = scmp.ge.s32.totalorder %s9, 6
    %s16 = sphi 0, %s35
    %s17 = sphi 0, %s31
    %s18 = sphi 0, %s27
    %s19 = sphi 0, %s16
    %s20 = sphi 0, %s17
    %s21 = sphi 0, %s18
    %s22 = sphi 0, %s19
    %s23 = sphi 0, %s20
    %s24 = sphi 0, %s21
    %s40 = sphi 0, %s42
    %s43 = sphi 0, %s40
    %s44 = sphi 0, %s43
    %s60 = sphi 0, %s44
    %s68 = sphi 0, %s70
    %s71 = sphi 0, %s68
    %s72 = sphi 0, %s71
    %s88 = sphi 0, %s72
    %s94 = sphi 0, %s96
    %s97 = sphi 0, %s94
    %s98 = sphi 0, %s97
    %s114 = sphi 0, %s98
    %s122 = sphi 0, %s124
    %s125 = sphi 0, %s122
    %s126 = sphi 0, %s125
    %s142 = sphi 0, %s126
  $region4: #{conv_encoder_forward.6} parent=0 // loop_header_branch
    %12 = sbr.rel (%p10) target = $region8
  $region5: #{conv_encoder_forward.6} parent=0 // loop_body
    %s14 = ssub.s32 %s9, 1
    %s15 = ssub.s32 %s9, 2
    %s25 = sadd.s32 1, %s18
    %p26 = scmp.ge.s32.totalorder %s25, 4
    %s27 = scalar_select %p26, 0, %s25
    %s28 = sadd.s32 1, %s17
    %s29 = scalar_select %p26, %s28, %s17
    %p30 = scmp.ge.s32.totalorder %s29, 1
    %s31 = scalar_select %p30, 0, %s29
    %s32 = sadd.s32 1, %s16
    %s33 = scalar_select %p30, %s32, %s16
    %p34 = scmp.ge.s32.totalorder %s33, 1
    %s35 = scalar_select %p34, 0, %s33
    %s36 = ssub.s32 %s16, %s35
    %s37 = ssub.s32 %s18, %s27
    %s38 = sor.u32 %s36, %s37
    %p39 = scmp.eq.s32.totalorder %s38, 0
    %s41 = sadd.s32 %s40, 1
    %s42 = scalar_select %p39, %s40, %s41
    %p45 = pneg %p39
    %p46 = scmp.eq.s32.totalorder %s9, 3
    %p47 = por %p45, %p46
    %p48 = scmp.ne.s32.totalorder %s40, %s43
    %p49 = scmp.eq.s32.totalorder %s9, 0
    %p50 = por %p48, %p49
    %p51 = scmp.ne.s32.totalorder %s40, %s43
    %p52 = scmp.eq.s32.totalorder %s14, 3
    %p53 = por %p51, %p52
    %p54 = scmp.ne.s32.totalorder %s43, %s44
    %p55 = scmp.eq.s32.totalorder %s14, 0
    %p56 = por %p54, %p55
    %p57 = scmp.ne.s32.totalorder %s43, %s44
    %p58 = scmp.eq.s32.totalorder %s15, 3
    %p59 = por %p57, %p58
    %p61 = scmp.ne.s32.totalorder %s44, %s60
    %p62 = scmp.eq.s32.totalorder %s15, 0
    %p63 = por %p61, %p62
    %s64 = ssub.s32 %s18, %s27
    %s65 = ssub.s32 %s17, %s31
    %s66 = sor.u32 %s64, %s65
    %p67 = scmp.eq.s32.totalorder %s66, 0
    %s69 = sadd.s32 %s68, 1
    %s70 = scalar_select %p67, %s68, %s69
    %p73 = pneg %p67
    %p74 = scmp.eq.s32.totalorder %s9, 3
    %p75 = por %p73, %p74
    %p76 = scmp.ne.s32.totalorder %s68, %s71
    %p77 = scmp.eq.s32.totalorder %s9, 0
    %p78 = por %p76, %p77
    %p79 = scmp.ne.s32.totalorder %s68, %s71
    %p80 = scmp.eq.s32.totalorder %s14, 3
    %p81 = por %p79, %p80
    %p82 = scmp.ne.s32.totalorder %s71, %s72
    %p83 = scmp.eq.s32.totalorder %s14, 0
    %p84 = por %p82, %p83
    %p85 = scmp.ne.s32.totalorder %s71, %s72
    %p86 = scmp.eq.s32.totalorder %s15, 3
    %p87 = por %p85, %p86
    %p89 = scmp.ne.s32.totalorder %s72, %s88
    %p90 = scmp.eq.s32.totalorder %s15, 0
    %p91 = por %p89, %p90
    %s92 = ssub.s32 %s17, %s31
    %p93 = scmp.eq.s32.totalorder %s92, 0
    %s95 = sadd.s32 %s94, 1
    %s96 = scalar_select %p93, %s94, %s95
    %p99 = pneg %p93
    %p100 = scmp.eq.s32.totalorder %s9, 3
    %p101 = por %p99, %p100
    %p102 = scmp.ne.s32.totalorder %s94, %s97
    %p103 = scmp.eq.s32.totalorder %s9, 0
    %p104 = por %p102, %p103
    %p105 = scmp.ne.s32.totalorder %s94, %s97
    %p106 = scmp.eq.s32.totalorder %s14, 3
    %p107 = por %p105, %p106
    %p108 = scmp.ne.s32.totalorder %s97, %s98
    %p109 = scmp.eq.s32.totalorder %s14, 0
    %p110 = por %p108, %p109
    %p111 = scmp.ne.s32.totalorder %s97, %s98
    %p112 = scmp.eq.s32.totalorder %s15, 3
    %p113 = por %p111, %p112
    %p115 = scmp.ne.s32.totalorder %s98, %s114
    %p116 = scmp.eq.s32.totalorder %s15, 0
    %p117 = por %p115, %p116
    %s118 = ssub.s32 %s16, %s35
    %s119 = ssub.s32 %s17, %s31
    %s120 = sor.u32 %s118, %s119
    %p121 = scmp.eq.s32.totalorder %s120, 0
    %s123 = sadd.s32 %s122, 1
    %s124 = scalar_select %p121, %s122, %s123
    %p127 = pneg %p121
    %p128 = scmp.eq.s32.totalorder %s9, 3
    %p129 = por %p127, %p128
    %p130 = scmp.ne.s32.totalorder %s122, %s125
    %p131 = scmp.eq.s32.totalorder %s9, 0
    %p132 = por %p130, %p131
    %p133 = scmp.ne.s32.totalorder %s122, %s125
    %p134 = scmp.eq.s32.totalorder %s14, 3
    %p135 = por %p133, %p134
    %p136 = scmp.ne.s32.totalorder %s125, %s126
    %p137 = scmp.eq.s32.totalorder %s14, 0
    %p138 = por %p136, %p137
    %p139 = scmp.ne.s32.totalorder %s125, %s126
    %p140 = scmp.eq.s32.totalorder %s15, 3
    %p141 = por %p139, %p140
    %p143 = scmp.ne.s32.totalorder %s126, %s142
    %p144 = scmp.eq.s32.totalorder %s15, 0
    %p145 = por %p143, %p144
    %p146 = scmp.le.s32.totalorder 1, %s9
    %p147 = scmp.lt.s32.totalorder %s9, 5
    %p148 = pnand %p146, %p147
    %p149 = pneg %p148
    // Predicated region
    $region9: #{conv_encoder_forward.6} parent=5 // pred_check
      _
    $region10: #{conv_encoder_forward.6} parent=5 // pred_check_branch
      %151 = sbr.rel (%p148) target = $region12
    $region11: #{conv_encoder_forward.6} parent=5 // pred_region
      %s152 = ssub.s32 %s9, 1
      // Predicated region
      $region13: #{conv_encoder_forward.6} parent=11 // pred_check
        %p153 = pneg %p110
      $region14: #{conv_encoder_forward.6} parent=11 // pred_check_branch
        %155 = sbr.rel (%p153) target = $region16
      $region15: #{conv_encoder_forward.6} parent=11 // pred_region
        %p156 = scmp.lt.s32.totalorder %s20, 0
        %s157 = scalar_select %p156, %s20, 0
        %s158 = scalar_lea.vmem %s2, %s157
      $region16: #{conv_encoder_forward.6} parent=11 // pred_fallthru
        _
    $region12: #{conv_encoder_forward.6} parent=5 // pred_fallthru
      _
    %p159 = scmp.lt.s32.totalorder %s9, 4
    // Predicated region
    $region17: #{conv_encoder_forward.6} parent=5 // pred_check
      %p160 = pneg %p159
    $region18: #{conv_encoder_forward.6} parent=5 // pred_check_branch
      %162 = sbr.rel (%p160) target = $region20
    $region19: #{conv_encoder_forward.6} parent=5 // pred_region
      // Predicated region
      $region21: #{conv_encoder_forward.6} parent=19 // pred_check
        %p163 = pneg %p50
      $region22: #{conv_encoder_forward.6} parent=19 // pred_check_branch
        %165 = sbr.rel (%p163) target = $region24
      $region23: #{conv_encoder_forward.6} parent=19 // pred_region
        %s166 = smul.u32 4, %s18
        %p167 = scmp.lt.s32.totalorder %s16, 0
        %s168 = scalar_select %p167, %s16, 0
        %p169 = scmp.lt.s32.totalorder %s166, 15
        %s170 = scalar_select %p169, %s166, 15
        %s171 = smul.addr %s168, 16
        %s172 = sadd.s32 %s170, %s171
        %s173 = scalar_lea.vmem %s0, %s172
        %s174 = smul.u32 4, %s18
      $region24: #{conv_encoder_forward.6} parent=19 // pred_fallthru
        _
      // Predicated region
      $region25: #{conv_encoder_forward.6} parent=19 // pred_check
        %p175 = pneg %p78
      $region26: #{conv_encoder_forward.6} parent=19 // pred_check_branch
        %177 = sbr.rel (%p175) target = $region28
      $region27: #{conv_encoder_forward.6} parent=19 // pred_region
        %s178 = smul.u32 64, %s18
        %p179 = scmp.lt.s32.totalorder %s178, 255
        %s180 = scalar_select %p179, %s178, 255
        %p181 = scmp.lt.s32.totalorder %s17, 0
        %s182 = scalar_select %p181, %s17, 0
        %s183 = sadd.s32 %s182, %s180
        %s184 = smul.addr %s183, 4
        %s185 = scalar_lea.vmem %s1, %s184
        %s186 = smul.u32 64, %s18
      $region28: #{conv_encoder_forward.6} parent=19 // pred_fallthru
        _
    $region20: #{conv_encoder_forward.6} parent=5 // pred_fallthru
      _
    %p187 = scmp.le.s32.totalorder 1, %s9
    %p188 = scmp.lt.s32.totalorder %s9, 5
    %p189 = pnand %p187, %p188
    %p190 = pneg %p189
    // Predicated region
    $region29: #{conv_encoder_forward.6} parent=5 // pred_check
      _
    $region30: #{conv_encoder_forward.6} parent=5 // pred_check_branch
      %192 = sbr.rel (%p189) target = $region32
    $region31: #{conv_encoder_forward.6} parent=5 // pred_region
      %s193 = ssub.s32 %s9, 1
      %s194 = smul.u32 4, %s21
      %p195 = scmp.lt.s32.totalorder %s19, 0
      %s196 = scalar_select %p195, %s19, 0
      %p197 = scmp.lt.s32.totalorder %s194, 15
      %s198 = scalar_select %p197, %s194, 15
      %s199 = smul.addr %s196, 16
      %s200 = sadd.s32 %s198, %s199
      %s201 = scalar_lea.vmem %s0, %s200
      %p202 = pneg %p56
      %p203 = pneg %p53
      %s204 = smul.u32 64, %s21
      %p205 = scmp.lt.s32.totalorder %s204, 255
      %s206 = scalar_select %p205, %s204, 255
      %p207 = scmp.lt.s32.totalorder %s20, 0
      %s208 = scalar_select %p207, %s20, 0
      %s209 = sadd.s32 %s208, %s206
      %s210 = smul.addr %s209, 4
      %s211 = scalar_lea.vmem %s1, %s210
      %p212 = pneg %p84
      %p213 = pneg %p81
      %p214 = scmp.lt.s32.totalorder %s20, 0
      %s215 = scalar_select %p214, %s20, 0
      %s216 = scalar_lea.vmem %s2, %s215
      %p217 = pneg %p110
      %p218 = pneg %p107
      %p219 = pneg %p138
      %p220 = pneg %p135
      %p221 = scmp.lt.s32.totalorder %s19, 0
      %s222 = scalar_select %p221, %s19, 0
      %p223 = scmp.lt.s32.totalorder %s20, 0
      %s224 = scalar_select %p223, %s20, 0
      %s225 = sadd.s32 %s224, %s222
      %s226 = scalar_lea.vmem %s3, %s225
      %s227 = smul.u32 4, %s21
      %p228 = scmp.lt.s32.totalorder %s19, 0
      %s229 = scalar_select %p228, %s19, 0
      %p230 = scmp.lt.s32.totalorder %s227, 15
      %s231 = scalar_select %p230, %s227, 15
      %s232 = smul.addr %s229, 16
      %s233 = sadd.s32 %s231, %s232
      %s234 = scalar_lea.vmem %s0, %s233
      %s235 = smul.u32 4, %s21
      %s236 = smul.u32 64, %s21
      %p237 = scmp.lt.s32.totalorder %s236, 255
      %s238 = scalar_select %p237, %s236, 255
      %p239 = scmp.lt.s32.totalorder %s20, 0
      %s240 = scalar_select %p239, %s20, 0
      %s241 = sadd.s32 %s240, %s238
      %s242 = smul.addr %s241, 4
      %s243 = scalar_lea.vmem %s1, %s242
      %s244 = smul.u32 64, %s21
      %p245 = scmp.lt.s32.totalorder %s20, 0
      %s246 = scalar_select %p245, %s20, 0
      %s247 = scalar_lea.vmem %s2, %s246
      %p248 = scmp.lt.s32.totalorder %s19, 0
      %s249 = scalar_select %p248, %s19, 0
      %p250 = scmp.lt.s32.totalorder %s20, 0
      %s251 = scalar_select %p250, %s20, 0
      %s252 = sadd.s32 %s251, %s249
      %s253 = scalar_lea.vmem %s3, %s252
      %p255 = scmp.eq.s32.totalorder %s21, 0
      // Predicated region
      $region33: #{conv_encoder_forward.6} parent=31 // pred_check
        %p256 = pneg %p255
      $region34: #{conv_encoder_forward.6} parent=31 // pred_check_branch
        %258 = sbr.rel (%p256) target = $region36
      $region35: #{conv_encoder_forward.6} parent=31 // pred_region
        %259 = vst [vmem:[#allocation2] sm:$0x3] 0.0
      $region36: #{conv_encoder_forward.6} parent=31 // pred_fallthru
        _
      %v260 = vld [vmem:[#allocation2] sm:$0x3]
      %v261 = vld [vmem:[%s234] sm:$0xf]
      %v262 = vld [vmem:[%s243] sm:$0xf]
      %v263 = vld [vmem:[%s243 + $0x4] sm:$0xf]
      %v264 = vld [vmem:[%s243 + $0x8] sm:$0xf]
      %v265 = vld [vmem:[%s243 + $0xc] sm:$0xf]
      %v266 = vld [vmem:[%s243 + $0x10] sm:$0xf]
      %v267 = vld [vmem:[%s243 + $0x14] sm:$0xf]
      %v268 = vld [vmem:[%s243 + $0x18] sm:$0xf]
      %v269 = vld [vmem:[%s243 + $0x1c] sm:$0xf]
      %v270 = vld [vmem:[%s243 + $0x20] sm:$0xf]
      %v271 = vld [vmem:[%s243 + $0x24] sm:$0xf]
      %v272 = vld [vmem:[%s243 + $0x28] sm:$0xf]
      %v273 = vld [vmem:[%s243 + $0x2c] sm:$0xf]
      %v274 = vld [vmem:[%s243 + $0x30] sm:$0xf]
      %v275 = vld [vmem:[%s243 + $0x34] sm:$0xf]
      %v276 = vld [vmem:[%s243 + $0x38] sm:$0xf]
      %v277 = vld [vmem:[%s243 + $0x3c] sm:$0xf]
      %v278 = vld [vmem:[%s243 + $0x40] sm:$0xf]
      %v279 = vld [vmem:[%s243 + $0x44] sm:$0xf]
      %v280 = vld [vmem:[%s243 + $0x48] sm:$0xf]
      %v281 = vld [vmem:[%s243 + $0x4c] sm:$0xf]
      %v282 = vld [vmem:[%s243 + $0x50] sm:$0xf]
      %v283 = vld [vmem:[%s243 + $0x54] sm:$0xf]
      %v284 = vld [vmem:[%s243 + $0x58] sm:$0xf]
      %v285 = vld [vmem:[%s243 + $0x5c] sm:$0xf]
      %v286 = vld [vmem:[%s243 + $0x60] sm:$0xf]
      %v287 = vld [vmem:[%s243 + $0x64] sm:$0xf]
      %v288 = vld [vmem:[%s243 + $0x68] sm:$0xf]
      %v289 = vld [vmem:[%s243 + $0x6c] sm:$0xf]
      %v290 = vld [vmem:[%s243 + $0x70] sm:$0xf]
      %v291 = vld [vmem:[%s243 + $0x74] sm:$0xf]
      %v292 = vld [vmem:[%s243 + $0x78] sm:$0xf]
      %v293 = vld [vmem:[%s243 + $0x7c] sm:$0xf]
      %v294 = vld [vmem:[%s243 + $0x80] sm:$0xf]
      %v295 = vld [vmem:[%s243 + $0x84] sm:$0xf]
      %v296 = vld [vmem:[%s243 + $0x88] sm:$0xf]
      %v297 = vld [vmem:[%s243 + $0x8c] sm:$0xf]
      %v298 = vld [vmem:[%s243 + $0x90] sm:$0xf]
      %v299 = vld [vmem:[%s243 + $0x94] sm:$0xf]
      %v300 = vld [vmem:[%s243 + $0x98] sm:$0xf]
      %v301 = vld [vmem:[%s243 + $0x9c] sm:$0xf]
      %v302 = vld [vmem:[%s243 + $0xa0] sm:$0xf]
      %v303 = vld [vmem:[%s243 + $0xa4] sm:$0xf]
      %v304 = vld [vmem:[%s243 + $0xa8] sm:$0xf]
      %v305 = vld [vmem:[%s243 + $0xac] sm:$0xf]
      %v306 = vld [vmem:[%s243 + $0xb0] sm:$0xf]
      %v307 = vld [vmem:[%s243 + $0xb4] sm:$0xf]
      %v308 = vld [vmem:[%s243 + $0xb8] sm:$0xf]
      %v309 = vld [vmem:[%s243 + $0xbc] sm:$0xf]
      %v310 = vld [vmem:[%s243 + $0xc0] sm:$0xf]
      %v311 = vld [vmem:[%s243 + $0xc4] sm:$0xf]
      %v312 = vld [vmem:[%s243 + $0xc8] sm:$0xf]
      %v313 = vld [vmem:[%s243 + $0xcc] sm:$0xf]
      %v314 = vld [vmem:[%s243 + $0xd0] sm:$0xf]
      %v315 = vld [vmem:[%s243 + $0xd4] sm:$0xf]
      %v316 = vld [vmem:[%s243 + $0xd8] sm:$0xf]
      %v317 = vld [vmem:[%s243 + $0xdc] sm:$0xf]
      %v318 = vld [vmem:[%s243 + $0xe0] sm:$0xf]
      %v319 = vld [vmem:[%s243 + $0xe4] sm:$0xf]
      %v320 = vld [vmem:[%s243 + $0xe8] sm:$0xf]
      %v321 = vld [vmem:[%s243 + $0xec] sm:$0xf]
      %v322 = vld [vmem:[%s243 + $0xf0] sm:$0xf]
      %v323 = vld [vmem:[%s243 + $0xf4] sm:$0xf]
      %v324 = vld [vmem:[%s243 + $0xf8] sm:$0xf]
      %v325 = vld [vmem:[%s243 + $0xfc] sm:$0xf]
      %v328 = vunpack.c.l.s4 1966171168
      %v329 = vunpack.c.0.s8 %v328
      %v330 = vlaneseq
      %v331 = vshrl.u32 %v330, 7
      %v332 = vsub.s32 %v329, %v331
      %v333 = vrot.slane %v261, %v332
      %v334 = vcombine.high %v333, %v333
      %v336 = vunpack.c.l.s4 1966171168
      %v337 = vunpack.c.0.s8 %v336
      %v338 = vlaneseq
      %v339 = vshrl.u32 %v338, 7
      %v340 = vsub.s32 %v337, %v339
      %v341 = vrot.slane %v333, %v340
      %v343 = vunpack.c.l.s4 1966171168
      %v344 = vunpack.c.0.s8 %v343
      %v345 = vlaneseq
      %v346 = vshrl.u32 %v345, 7
      %v347 = vsub.s32 %v344, %v346
      %v348 = vrot.slane %v334, %v347
      %v349 = vcombine.high %v341, %v341
      %v350 = vcombine.high %v348, %v348
      %v419 = vunpack.c.l.b16 %v262
      %v420 = vunpack.c.l.b16 %v263
      %v421 = vunpack.c.l.b16 %v264
      %v422 = vunpack.c.l.b16 %v265
      %v423 = vunpack.c.l.b16 %v266
      %v424 = vunpack.c.l.b16 %v267
      %v425 = vunpack.c.l.b16 %v268
      %v426 = vunpack.c.l.b16 %v269
      %v427 = vunpack.c.l.b16 %v270
      %v428 = vunpack.c.l.b16 %v271
      %v429 = vunpack.c.l.b16 %v272
      %v430 = vunpack.c.l.b16 %v273
      %v431 = vunpack.c.l.b16 %v274
      %v432 = vunpack.c.l.b16 %v275
      %v433 = vunpack.c.l.b16 %v276
      %v434 = vunpack.c.l.b16 %v277
      %v435 = vunpack.c.l.b16 %v278
      %v436 = vunpack.c.l.b16 %v279
      %v437 = vunpack.c.l.b16 %v280
      %v438 = vunpack.c.l.b16 %v281
      %v439 = vunpack.c.l.b16 %v282
      %v440 = vunpack.c.l.b16 %v283
      %v441 = vunpack.c.l.b16 %v284
      %v442 = vunpack.c.l.b16 %v285
      %v443 = vunpack.c.l.b16 %v286
      %v444 = vunpack.c.l.b16 %v287
      %v445 = vunpack.c.l.b16 %v288
      %v446 = vunpack.c.l.b16 %v289
      %v447 = vunpack.c.l.b16 %v290
      %v448 = vunpack.c.l.b16 %v291
      %v449 = vunpack.c.l.b16 %v292
      %v450 = vunpack.c.l.b16 %v293
      %v451 = vunpack.c.l.b16 %v294
      %v452 = vunpack.c.l.b16 %v295
      %v453 = vunpack.c.l.b16 %v296
      %v454 = vunpack.c.l.b16 %v297
      %v455 = vunpack.c.l.b16 %v298
      %v456 = vunpack.c.l.b16 %v299
      %v457 = vunpack.c.l.b16 %v300
      %v458 = vunpack.c.l.b16 %v301
      %v459 = vunpack.c.l.b16 %v302
      %v460 = vunpack.c.l.b16 %v303
      %v461 = vunpack.c.l.b16 %v304
      %v462 = vunpack.c.l.b16 %v305
      %v463 = vunpack.c.l.b16 %v306
      %v464 = vunpack.c.l.b16 %v307
      %v465 = vunpack.c.l.b16 %v308
      %v466 = vunpack.c.l.b16 %v309
      %v467 = vunpack.c.l.b16 %v310
      %v468 = vunpack.c.l.b16 %v311
      %v469 = vunpack.c.l.b16 %v312
      %v470 = vunpack.c.l.b16 %v313
      %v471 = vunpack.c.l.b16 %v314
      %v472 = vunpack.c.l.b16 %v315
      %v473 = vunpack.c.l.b16 %v316
      %v474 = vunpack.c.l.b16 %v317
      %v475 = vunpack.c.l.b16 %v318
      %v476 = vunpack.c.l.b16 %v319
      %v477 = vunpack.c.l.b16 %v320
      %v478 = vunpack.c.l.b16 %v321
      %v479 = vunpack.c.l.b16 %v322
      %v480 = vunpack.c.l.b16 %v323
      %v481 = vunpack.c.l.b16 %v324
      %v482 = vunpack.c.l.b16 %v325
      %v483 = vpack.c.b16 %v420, %v419
      %v484 = vpack.c.b16 %v422, %v421
      %v485 = vpack.c.b16 %v424, %v423
      %v486 = vpack.c.b16 %v426, %v425
      %v487 = vpack.c.b16 %v428, %v427
      %v488 = vpack.c.b16 %v430, %v429
      %v489 = vpack.c.b16 %v432, %v431
      %v490 = vpack.c.b16 %v434, %v433
      %v491 = vpack.c.b16 %v436, %v435
      %v492 = vpack.c.b16 %v438, %v437
      %v493 = vpack.c.b16 %v440, %v439
      %v494 = vpack.c.b16 %v442, %v441
      %v495 = vpack.c.b16 %v444, %v443
      %v496 = vpack.c.b16 %v446, %v445
      %v497 = vpack.c.b16 %v448, %v447
      %v498 = vpack.c.b16 %v450, %v449
      %v499 = vpack.c.b16 %v452, %v451
      %v500 = vpack.c.b16 %v454, %v453
      %v501 = vpack.c.b16 %v456, %v455
      %v502 = vpack.c.b16 %v458, %v457
      %v503 = vpack.c.b16 %v460, %v459
      %v504 = vpack.c.b16 %v462, %v461
      %v505 = vpack.c.b16 %v464, %v463
      %v506 = vpack.c.b16 %v466, %v465
      %v507 = vpack.c.b16 %v468, %v467
      %v508 = vpack.c.b16 %v470, %v469
      %v509 = vpack.c.b16 %v472, %v471
      %v510 = vpack.c.b16 %v474, %v473
      %v511 = vpack.c.b16 %v476, %v475
      %v512 = vpack.c.b16 %v478, %v477
      %v513 = vpack.c.b16 %v480, %v479
      %v514 = vpack.c.b16 %v482, %v481
      %547 = vmatprep.subr.bf16.mxu0 0
      %548 = vmatpush1.bf16.msra.mxu0 %v483
      %549 = vmatprep.subr.bf16.mxu0 0
      %550 = vmatpush1.bf16.msra.mxu0 %v484
      %551 = vmatprep.subr.bf16.mxu0 0
      %552 = vmatpush1.bf16.msra.mxu0 %v485
      %553 = vmatprep.subr.bf16.mxu0 0
      %554 = vmatpush1.bf16.msra.mxu0 %v486
      %555 = vmatprep.subr.bf16.mxu0 0
      %556 = vmatpush1.bf16.msra.mxu0 %v487
      %557 = vmatprep.subr.bf16.mxu0 0
      %558 = vmatpush1.bf16.msra.mxu0 %v488
      %559 = vmatprep.subr.bf16.mxu0 0
      %560 = vmatpush1.bf16.msra.mxu0 %v489
      %561 = vmatprep.subr.bf16.mxu0 0
      %562 = vmatpush1.bf16.msra.mxu0 %v490
      %563 = vmatprep.subr.bf16.mxu0 0
      %564 = vmatpush1.bf16.msra.mxu0 %v491
      %565 = vmatprep.subr.bf16.mxu0 0
      %566 = vmatpush1.bf16.msra.mxu0 %v492
      %567 = vmatprep.subr.bf16.mxu0 0
      %568 = vmatpush1.bf16.msra.mxu0 %v493
      %569 = vmatprep.subr.bf16.mxu0 0
      %570 = vmatpush1.bf16.msra.mxu0 %v494
      %571 = vmatprep.subr.bf16.mxu0 0
      %572 = vmatpush1.bf16.msra.mxu0 %v495
      %573 = vmatprep.subr.bf16.mxu0 0
      %574 = vmatpush1.bf16.msra.mxu0 %v496
      %575 = vmatprep.subr.bf16.mxu0 0
      %576 = vmatpush1.bf16.msra.mxu0 %v497
      %577 = vmatprep.subr.bf16.mxu0 0
      %578 = vmatpush1.bf16.msra.mxu0 %v498
      %579 = vmatprep.mubr.bf16.mxu0 %v348
      %580 = vmatmul.mubr.bf16.gmra.mrb[0].mxu0 %v341
      %v581 = vpop.f32.mrb[0].mxu0
      %v582 = vadd.f32 0.0, %v581
      %v583 = vpop.f32.mrb[0].mxu0
      %v584 = vpop.f32.mrb[0].mxu0
      %v585 = vpop.f32.mrb[0].mxu0
      %586 = vdwg.mxu0
      %587 = vmatprep.subr.bf16.mxu0 0
      %588 = vmatpush1.bf16.msra.mxu0 %v499
      %589 = vmatprep.subr.bf16.mxu0 0
      %590 = vmatpush1.bf16.msra.mxu0 %v500
      %591 = vmatprep.subr.bf16.mxu0 0
      %592 = vmatpush1.bf16.msra.mxu0 %v501
      %593 = vmatprep.subr.bf16.mxu0 0
      %594 = vmatpush1.bf16.msra.mxu0 %v502
      %595 = vmatprep.subr.bf16.mxu0 0
      %596 = vmatpush1.bf16.msra.mxu0 %v503
      %597 = vmatprep.subr.bf16.mxu0 0
      %598 = vmatpush1.bf16.msra.mxu0 %v504
      %599 = vmatprep.subr.bf16.mxu0 0
      %600 = vmatpush1.bf16.msra.mxu0 %v505
      %601 = vmatprep.subr.bf16.mxu0 0
      %602 = vmatpush1.bf16.msra.mxu0 %v506
      %603 = vmatprep.subr.bf16.mxu0 0
      %604 = vmatpush1.bf16.msra.mxu0 %v507
      %605 = vmatprep.subr.bf16.mxu0 0
      %606 = vmatpush1.bf16.msra.mxu0 %v508
      %607 = vmatprep.subr.bf16.mxu0 0
      %608 = vmatpush1.bf16.msra.mxu0 %v509
      %609 = vmatprep.subr.bf16.mxu0 0
      %610 = vmatpush1.bf16.msra.mxu0 %v510
      %611 = vmatprep.subr.bf16.mxu0 0
      %612 = vmatpush1.bf16.msra.mxu0 %v511
      %613 = vmatprep.subr.bf16.mxu0 0
      %614 = vmatpush1.bf16.msra.mxu0 %v512
      %615 = vmatprep.subr.bf16.mxu0 0
      %616 = vmatpush1.bf16.msra.mxu0 %v513
      %617 = vmatprep.subr.bf16.mxu0 0
      %618 = vmatpush1.bf16.msra.mxu0 %v514
      %619 = vmatprep.mubr.bf16.mxu0 %v350
      %620 = vmatmul.mubr.bf16.gmra.mrb[0].mxu0 %v349
      %v621 = vpop.f32.mrb[0].mxu0
      %v622 = vadd.f32 %v582, %v621
      %v623 = vpop.f32.mrb[0].mxu0
      %v624 = vpop.f32.mrb[0].mxu0
      %v625 = vpop.f32.mrb[0].mxu0
      %626 = vdwg.mxu0
      %v627 = vadd.f32 %v260, %v622
      %628 = vst [vmem:[#allocation2] sm:$0x3] %v627
      %p629 = scmp.eq.s32.totalorder %s21, 3
      // Predicated region
      $region37: #{conv_encoder_forward.6} parent=31 // pred_check
        %p630 = pneg %p629
      $region38: #{conv_encoder_forward.6} parent=31 // pred_check_branch
        %632 = sbr.rel (%p630) target = $region40
      $region39: #{conv_encoder_forward.6} parent=31 // pred_region
        %v633 = vld [vmem:[#allocation2] sm:$0x3]
        %v634 = vld [vmem:[%s247] sm:$0x1]
        %v636 = vlaneseq
        %v637 = vshrl.u32 %v636, 7
        %v638 = vsub.s32 0, %v637
        %v639 = vrot.slane %v634, %v638
        %v641 = vadd.f32 %v633, %v639
        %v642 = vmax.f32 %v641, 0.0
        %v643 = vpack.c.bf16 %v642, %v642
        %644 = vst [vmem:[%s253] sm:$0x1] %v643
      $region40: #{conv_encoder_forward.6} parent=31 // pred_fallthru
        _
      %p645 = scmp.lt.s32.totalorder %s19, 0
      %s646 = scalar_select %p645, %s19, 0
      %p647 = scmp.lt.s32.totalorder %s20, 0
      %s648 = scalar_select %p647, %s20, 0
      %s649 = sadd.s32 %s648, %s646
      %s650 = scalar_lea.vmem %s3, %s649
      // Predicated region
      $region41: #{conv_encoder_forward.6} parent=31 // pred_check
        %p651 = pneg %p135
      $region42: #{conv_encoder_forward.6} parent=31 // pred_check_branch
        %653 = sbr.rel (%p651) target = $region44
      $region43: #{conv_encoder_forward.6} parent=31 // pred_region
        _
      $region44: #{conv_encoder_forward.6} parent=31 // pred_fallthru
        _
      // Predicated region
      $region45: #{conv_encoder_forward.6} parent=31 // pred_check
        %p654 = pneg %p135
      $region46: #{conv_encoder_forward.6} parent=31 // pred_check_branch
        %656 = sbr.rel (%p654) target = $region48
      $region47: #{conv_encoder_forward.6} parent=31 // pred_region
        %p657 = scmp.lt.s32.totalorder %s19, 0
        %s658 = scalar_select %p657, %s19, 0
        %p659 = scmp.lt.s32.totalorder %s20, 0
        %s660 = scalar_select %p659, %s20, 0
        %s661 = sadd.s32 %s660, %s658
        %s662 = scalar_lea.vmem %s3, %s661
      $region48: #{conv_encoder_forward.6} parent=31 // pred_fallthru
        _
    $region32: #{conv_encoder_forward.6} parent=5 // pred_fallthru
      _
    %p663 = scmp.le.s32.totalorder 2, %s9
    // Predicated region
    $region49: #{conv_encoder_forward.6} parent=5 // pred_check
      %p664 = pneg %p663
    $region50: #{conv_encoder_forward.6} parent=5 // pred_check_branch
      %666 = sbr.rel (%p664) target = $region52
    $region51: #{conv_encoder_forward.6} parent=5 // pred_region
      %s667 = ssub.s32 %s9, 2
    $region52: #{conv_encoder_forward.6} parent=5 // pred_fallthru
      _
  $region6: #{conv_encoder_forward.6} parent=0 // loop_footer
    %s13 = sadd.s32 1, %s9
  $region7: #{conv_encoder_forward.6} parent=0 // loop_footer_branch
    %8 = sbr.rel target = $region3
  $region8: #{conv_encoder_forward.6} parent=0 // loop_exit
    _

// kernel: conv_encoder_forward.7
$region0: #{conv_encoder_forward.7}
  #allocation0 [shape = 'u32[]', space=smem, size = 0x4, offset = 0x4, fixed_abs, tag = 'smem constant byte address 0x4 - core index']
  #allocation1 [shape = 'u32[144,128]{1,0:T(1,128)}', space=vmem, size = 0x12000, scoped, tag = 'internal scratch']
  #allocation2 [shape = 'f32[2,128]{1,0:T(2,128)}', space=vmem, size = 0x400, scoped, tag = 'scratch operand']
  %s0 = inlined_call_operand.vmem [shape: bf16[2,128], index: 0, kind: input, shape index: {}]
  %s1 = inlined_call_operand.vmem [shape: bf16[128,128], index: 1, kind: input, shape index: {}]
  %s2 = inlined_call_operand.vmem [shape: f32[1,128], index: 2, kind: input, shape index: {}]
  %s3 = inlined_call_operand.vmem [shape: f32[2,128], index: 3, kind: output, shape index: {}]
  %s4 = sld [smem:[#allocation0]]
  $region30: #{conv_encoder_forward.7} parent=0
    _
  %s6 = ssub.s32 1, %s4
  %s7 = scalar_select 0, %s6, %s4
  // Predicated region
  $region2: #{conv_encoder_forward.7} parent=0 // pred_check
    _
  $region3: #{conv_encoder_forward.7} parent=0 // pred_check_branch
    %9 = sbr.rel (0) target = $region5
  $region4: #{conv_encoder_forward.7} parent=0 // pred_region
    _
  $region5: #{conv_encoder_forward.7} parent=0 // pred_fallthru
    _
  // Predicated region
  $region6: #{conv_encoder_forward.7} parent=0 // pred_check
    _
  $region7: #{conv_encoder_forward.7} parent=0 // pred_check_branch
    %11 = sbr.rel (0) target = $region9
  $region8: #{conv_encoder_forward.7} parent=0 // pred_region
    _
  $region9: #{conv_encoder_forward.7} parent=0 // pred_fallthru
    _
  // Predicated region
  $region10: #{conv_encoder_forward.7} parent=0 // pred_check
    _
  $region11: #{conv_encoder_forward.7} parent=0 // pred_check_branch
    %13 = sbr.rel (0) target = $region13
  $region12: #{conv_encoder_forward.7} parent=0 // pred_region
    _
  $region13: #{conv_encoder_forward.7} parent=0 // pred_fallthru
    _
  %p15 = scmp.eq.s32.totalorder 0, 0
  // Predicated region
  $region14: #{conv_encoder_forward.7} parent=0 // pred_check
    %p16 = pneg %p15
  $region15: #{conv_encoder_forward.7} parent=0 // pred_check_branch
    %18 = sbr.rel (%p16) target = $region17
  $region16: #{conv_encoder_forward.7} parent=0 // pred_region
    %19 = vst [vmem:[#allocation2] sm:$0x3] 0.0
  $region17: #{conv_encoder_forward.7} parent=0 // pred_fallthru
    _
  %v20 = vld [vmem:[#allocation2] sm:$0x3]
  %v21 = vld [vmem:[%s0] sm:$0x1]
  %v22 = vld [vmem:[%s1] sm:$0xf]
  %v23 = vld [vmem:[%s1 + $0x4] sm:$0xf]
  %v24 = vld [vmem:[%s1 + $0x8] sm:$0xf]
  %v25 = vld [vmem:[%s1 + $0xc] sm:$0xf]
  %v26 = vld [vmem:[%s1 + $0x10] sm:$0xf]
  %v27 = vld [vmem:[%s1 + $0x14] sm:$0xf]
  %v28 = vld [vmem:[%s1 + $0x18] sm:$0xf]
  %v29 = vld [vmem:[%s1 + $0x1c] sm:$0xf]
  %v30 = vld [vmem:[%s1 + $0x20] sm:$0xf]
  %v31 = vld [vmem:[%s1 + $0x24] sm:$0xf]
  %v32 = vld [vmem:[%s1 + $0x28] sm:$0xf]
  %v33 = vld [vmem:[%s1 + $0x2c] sm:$0xf]
  %v34 = vld [vmem:[%s1 + $0x30] sm:$0xf]
  %v35 = vld [vmem:[%s1 + $0x34] sm:$0xf]
  %v36 = vld [vmem:[%s1 + $0x38] sm:$0xf]
  %v37 = vld [vmem:[%s1 + $0x3c] sm:$0xf]
  %v54 = vunpack.c.l.b16 %v22
  %v55 = vunpack.c.l.b16 %v23
  %v56 = vunpack.c.l.b16 %v24
  %v57 = vunpack.c.l.b16 %v25
  %v58 = vunpack.c.l.b16 %v26
  %v59 = vunpack.c.l.b16 %v27
  %v60 = vunpack.c.l.b16 %v28
  %v61 = vunpack.c.l.b16 %v29
  %v62 = vunpack.c.l.b16 %v30
  %v63 = vunpack.c.l.b16 %v31
  %v64 = vunpack.c.l.b16 %v32
  %v65 = vunpack.c.l.b16 %v33
  %v66 = vunpack.c.l.b16 %v34
  %v67 = vunpack.c.l.b16 %v35
  %v68 = vunpack.c.l.b16 %v36
  %v69 = vunpack.c.l.b16 %v37
  %v70 = vpack.c.b16 %v55, %v54
  %v71 = vpack.c.b16 %v57, %v56
  %v72 = vpack.c.b16 %v59, %v58
  %v73 = vpack.c.b16 %v61, %v60
  %v74 = vpack.c.b16 %v63, %v62
  %v75 = vpack.c.b16 %v65, %v64
  %v76 = vpack.c.b16 %v67, %v66
  %v77 = vpack.c.b16 %v69, %v68
  %86 = vmatprep.subr.bf16.mxu0 0
  %87 = vmatpush1.bf16.msra.mxu0 %v70
  %88 = vmatprep.subr.bf16.mxu0 0
  %89 = vmatpush1.bf16.msra.mxu0 %v71
  %90 = vmatprep.subr.bf16.mxu0 0
  %91 = vmatpush1.bf16.msra.mxu0 %v72
  %92 = vmatprep.subr.bf16.mxu0 0
  %93 = vmatpush1.bf16.msra.mxu0 %v73
  %94 = vmatprep.subr.bf16.mxu0 0
  %95 = vmatpush1.bf16.msra.mxu0 %v74
  %96 = vmatprep.subr.bf16.mxu0 0
  %97 = vmatpush1.bf16.msra.mxu0 %v75
  %98 = vmatprep.subr.bf16.mxu0 0
  %99 = vmatpush1.bf16.msra.mxu0 %v76
  %100 = vmatprep.subr.bf16.mxu0 0
  %101 = vmatpush1.bf16.msra.mxu0 %v77
  %102 = vmatprep.subr.bf16.mxu0 0
  %103 = vmatpush1.bf16.msra.mxu0 0
  %104 = vmatprep.subr.bf16.mxu0 0
  %105 = vmatpush1.bf16.msra.mxu0 0
  %106 = vmatprep.subr.bf16.mxu0 0
  %107 = vmatpush1.bf16.msra.mxu0 0
  %108 = vmatprep.subr.bf16.mxu0 0
  %109 = vmatpush1.bf16.msra.mxu0 0
  %110 = vmatprep.subr.bf16.mxu0 0
  %111 = vmatpush1.bf16.msra.mxu0 0
  %112 = vmatprep.subr.bf16.mxu0 0
  %113 = vmatpush1.bf16.msra.mxu0 0
  %114 = vmatprep.subr.bf16.mxu0 0
  %115 = vmatpush1.bf16.msra.mxu0 0
  %116 = vmatprep.subr.bf16.mxu0 0
  %117 = vmatpush1.bf16.msra.mxu0 0
  %118 = vmatprep.mubr.bf16.mxu0 0
  %119 = vmatmul.mubr.bf16.gmra.mrb[0].mxu0 %v21
  %v120 = vpop.f32.mrb[0].mxu0
  %v121 = vadd.f32 0.0, %v120
  %v122 = vpop.f32.mrb[0].mxu0
  %v123 = vpop.f32.mrb[0].mxu0
  %v124 = vpop.f32.mrb[0].mxu0
  %125 = vdwg.mxu0
  %v126 = vadd.f32 %v20, %v121
  %127 = vst [vmem:[#allocation2] sm:$0x3] %v126
  // Predicated region
  $region18: #{conv_encoder_forward.7} parent=0 // pred_check
    %p128 = pneg %p15
  $region19: #{conv_encoder_forward.7} parent=0 // pred_check_branch
    %130 = sbr.rel (%p128) target = $region21
  $region20: #{conv_encoder_forward.7} parent=0 // pred_region
    %v131 = vld [vmem:[#allocation2] sm:$0x3]
    %v132 = vld [vmem:[%s2] sm:$0x1]
    %v134 = vlaneseq
    %v135 = vshrl.u32 %v134, 7
    %v136 = vsub.s32 0, %v135
    %v137 = vrot.slane %v132, %v136
    %v139 = vadd.f32 %v131, %v137
    %140 = vst [vmem:[%s3] sm:$0x3] %v139
  $region21: #{conv_encoder_forward.7} parent=0 // pred_fallthru
    _
  // Predicated region
  $region22: #{conv_encoder_forward.7} parent=0 // pred_check
    _
  $region23: #{conv_encoder_forward.7} parent=0 // pred_check_branch
    %142 = sbr.rel (0) target = $region25
  $region24: #{conv_encoder_forward.7} parent=0 // pred_region
    _
  $region25: #{conv_encoder_forward.7} parent=0 // pred_fallthru
    _
  // Predicated region
  $region26: #{conv_encoder_forward.7} parent=0 // pred_check
    _
  $region27: #{conv_encoder_forward.7} parent=0 // pred_check_branch
    %144 = sbr.rel (0) target = $region29
  $region28: #{conv_encoder_forward.7} parent=0 // pred_region
    _
  $region29: #{conv_encoder_forward.7} parent=0 // pred_fallthru
    _

</llo_original>
